<compile_context>
chip_gen: v6e
topology: v6e:2x2x1
jax: 0.10.0
libtpu: 0.0.40
codegen_flags: <defaults>
</compile_context>

<pallas_src>
import functools

import jax
import jax.numpy as jnp
import numpy as np
from jax.experimental import pallas as pl
from jax.experimental.pallas import tpu as pltpu

NEG_SLOPE = 0.01           # F.leaky_relu default
MAX_NODE_TILE = 512        # bf16 A tile 512x512 = 512 KiB -> fits v5e/v6e/v7x w/ 2x buffering

# Synthetic heterogeneous graph (all node types share one node count so the
# pre-stacked (R, n, n) adjacency / (T, n, f) feature tensors are rectangular).
CANONICAL_ETYPES = [
    ("user",   "follows",    "user"),
    ("user",   "buys",       "target"),
    ("target", "bought_by",  "user"),
    ("item",   "relates",    "target"),
    ("target", "related_to", "item"),
]
NTYPES = ["user", "target", "item"]               # stacking order of node features
NTYPE_IDX = {nt: i for i, nt in enumerate(NTYPES)}

# Relations grouped by destination type (consecutive grid steps sharing a dst
# keep the same f32 accumulator / output block resident), secondarily sorted
# by src type so consecutive relations can reuse the same X block.
DST_TYPES = []
for _, _, _d in CANONICAL_ETYPES:
    if _d not in DST_TYPES:
        DST_TYPES.append(_d)
REL_ORDER = []
for _dst in DST_TYPES:
    _grp = [sed for sed in CANONICAL_ETYPES if sed[2] == _dst]
    _grp.sort(key=lambda sed: NTYPE_IDX[sed[0]])
    REL_ORDER.extend(_grp)


def round_up(x, m):
    return ((x + m - 1) // m) * m


def pick_node_tile(n):
    # Largest (8,128)-aligned node tile <= MAX_NODE_TILE.  (Only halve
    # MAX_NODE_TILE for v7x if f32 operands were used; bf16 keeps 512 small.)
    return min(MAX_NODE_TILE, round_up(n, 128))


def build_schedule():
    """SMEM scalar-prefetch tables driving the data-dependent index maps."""
    src_idx = jnp.array([NTYPE_IDX[s] for (s, _, _) in REL_ORDER], jnp.int32)
    dst_idx = jnp.array([NTYPE_IDX[d] for (_, _, d) in REL_ORDER], jnp.int32)
    first, last = [], []
    for i, (_, _, d) in enumerate(REL_ORDER):
        first.append(1 if i == 0 or REL_ORDER[i - 1][2] != d else 0)
        last.append(1 if i == len(REL_ORDER) - 1 or REL_ORDER[i + 1][2] != d else 0)
    return (src_idx, dst_idx,
            jnp.array(first, jnp.int32), jnp.array(last, jnp.int32))


# ---------------------------------------------------------------------------
# Pallas kernels
# ---------------------------------------------------------------------------
def _rgcn_layer_kernel(src_ref, dst_ref, first_ref, last_ref,
                       x_ref, a_ref, wt_ref, o_ref, acc_ref, *,
                       act_slope, ones_col):
    del src_ref, dst_ref                       # consumed by the index maps only
    r = pl.program_id(1)
    k = pl.program_id(2)

    # Zero the f32 accumulator when a new dst group starts.
    @pl.when(jnp.logical_and(first_ref[r] == 1, k == 0))
    def _():
        acc_ref[...] = jnp.zeros_like(acc_ref)

    # Wh_tile = X_aug_tile @ W_aug_r^T  (bias folded as ones-column x bias-row),
    # bf16 MXU operands, f32 accumulation.
    wh = jnp.dot(x_ref[...], wt_ref[...], preferred_element_type=jnp.float32)

    # acc += A_tile @ Wh_tile   (per-relation mean already folded into A_norm)
    acc_ref[...] += jnp.dot(a_ref[...], wh.astype(jnp.bfloat16),
                            preferred_element_type=jnp.float32)

    # Flush once per dst group: next layer's activation + the ones column
    # (its folded bias row) live in this epilogue, not in the per-relation body.
    @pl.when(jnp.logical_and(last_ref[r] == 1, k == pl.num_programs(2) - 1))
    def _():
        h = acc_ref[...]
        if act_slope is not None:
            h = jnp.where(h >= 0, h, h * act_slope)
        col = jax.lax.broadcasted_iota(jnp.int32, h.shape, 1)
        h = jnp.where(col == ones_col, 1.0, h)
        o_ref[...] = h.astype(o_ref.dtype)


def fused_rgcn_layer(x_all, a_all, wt_all, src_idx, dst_idx, first, last, *,
                     tile_dst, tile_src, act_slope, ones_col):
    """One HeteroRGCNLayer as a single pallas_call, grid=(dst_tiles, R, src_tiles)."""
    t, _, din_pad = x_all.shape
    n_rel, ndst_pad, nsrc_pad = a_all.shape
    h_pad = wt_all.shape[2]

    grid = (ndst_pad // tile_dst, n_rel, nsrc_pad // tile_src)

    grid_spec = pltpu.PrefetchScalarGridSpec(
        num_scalar_prefetch=4,
        grid=grid,
        in_specs=[
            # X tile of this relation's src node type (data-dependent block idx)
            pl.BlockSpec((pl.Squeezed(), tile_src, din_pad),
                         lambda d, r, k, si, di, fi, li: (si[r], k, 0)),
            # adjacency tile A_r[dst_tile, src_tile]
            pl.BlockSpec((pl.Squeezed(), tile_dst, tile_src),
                         lambda d, r, k, si, di, fi, li: (r, d, k)),
            # augmented W_r^T (bias row folded in)
            pl.BlockSpec((pl.Squeezed(), din_pad, h_pad),
                         lambda d, r, k, si, di, fi, li: (r, 0, 0)),
        ],
        # dst block indexed by the relation's dst node type; constant across a
        # dst group and across src tiles -> written exactly once at the flush.
        out_specs=pl.BlockSpec((pl.Squeezed(), tile_dst, h_pad),
                               lambda d, r, k, si, di, fi, li: (di[r], d, 0)),
        scratch_shapes=[pltpu.VMEM((tile_dst, h_pad), jnp.float32)],
    )

    return pl.pallas_call(
        functools.partial(_rgcn_layer_kernel,
                          act_slope=act_slope, ones_col=ones_col),
        out_shape=jax.ShapeDtypeStruct((t, ndst_pad, h_pad), jnp.bfloat16),
        grid_spec=grid_spec,
        compiler_params=pltpu.CompilerParams(
            # dst-tile axis parallel (v7x megacore); relation/src are reduction.
            dimension_semantics=("parallel", "arbitrary", "arbitrary"),
            vmem_limit_bytes=48 * 1024 * 1024),
    )(src_idx, dst_idx, first, last, x_all, a_all, wt_all)


def _linear_kernel(x_ref, wt_ref, o_ref):
    o_ref[...] = jnp.dot(x_ref[...], wt_ref[...],
                         preferred_element_type=jnp.float32)


def linear_pallas(x, wt, *, tile_rows):
    """Final classifier: x_aug @ W_aug^T (bias folded via the ones column)."""
    n_pad, h_pad = x.shape
    out_pad = wt.shape[1]
    return pl.pallas_call(
        _linear_kernel,
        out_shape=jax.ShapeDtypeStruct((n_pad, out_pad), jnp.float32),
        grid=(n_pad // tile_rows,),
        in_specs=[pl.BlockSpec((tile_rows, h_pad), lambda i: (i, 0)),
                  pl.BlockSpec((h_pad, out_pad), lambda i: (0, 0))],
        out_specs=pl.BlockSpec((tile_rows, out_pad), lambda i: (i, 0)),
        compiler_params=pltpu.CompilerParams(
            dimension_semantics=("parallel",)),
    )(x, wt)


# ---------------------------------------------------------------------------
# Model forward
# ---------------------------------------------------------------------------
def prep_features(features, n_pad, din_pad, in_size):
    n, d = features.shape
    f = jnp.zeros((n_pad, din_pad), jnp.float32)
    f = f.at[:n, :d].set(features)
    f = f.at[:, in_size].set(1.0)          # ones column -> layer-0 folded bias
    return f.astype(jnp.bfloat16)


def hetero_rgcn_forward(params, graph, features, cfg):
    # layer-0 input: stacked (ntypes, n_pad, din_pad) bf16; 'target' slot comes
    # from `features`, the other slots from the learned embeddings.
    x = params["embed_stack"].at[NTYPE_IDX["target"]].set(
        prep_features(features, cfg["n_pad"], cfg["din0_pad"], cfg["in_size"]))
    n_gnn = len(params["gnn_wt"])
    for i, wt_all in enumerate(params["gnn_wt"]):
        x = fused_rgcn_layer(
            x, graph["a_all"], wt_all,
            graph["src_idx"], graph["dst_idx"], graph["first"], graph["last"],
            tile_dst=cfg["tile"], tile_src=cfg["tile"],
            # leaky_relu feeds the NEXT GNN layer only (module applies it to
            # layer inputs for i != 0, never before the classifier).
            act_slope=NEG_SLOPE if i < n_gnn - 1 else None,
            ones_col=cfg["hidden"])
    y = linear_pallas(x[NTYPE_IDX["target"]], params["final_wt"],
                      tile_rows=cfg["tile"])
    return y[:cfg["n_target"], :cfg["out_size"]]


# ---------------------------------------------------------------------------
# Deterministic parameter / input construction + f32 reference
# ---------------------------------------------------------------------------
def xavier_uniform(key, shape):
    fan_out, fan_in = shape  # matches nn.init.xavier_uniform_ on (num_nodes, in_size)
    bound = (6.0 / (fan_in + fan_out)) ** 0.5
    return jax.random.uniform(key, shape, jnp.float32, -bound, bound)


def linear_f32(key, din, dout):
    kw, kb = jax.random.split(key)
    bound = 1.0 / (din ** 0.5)
    w = jax.random.uniform(kw, (dout, din), jnp.float32, -bound, bound)
    b = jax.random.uniform(kb, (dout,), jnp.float32, -bound, bound)
    return w, b


def pack_wt(w, b, din_pad, dout_pad, bias_row):
    """Augmented W^T: rows [:din] = W^T, row `bias_row` = b, zeros elsewhere."""
    dout, din = w.shape
    wt = jnp.zeros((din_pad, dout_pad), jnp.float32)
    wt = wt.at[:din, :dout].set(w.T)
    wt = wt.at[bias_row, :dout].set(b)
    return wt.astype(jnp.bfloat16)


def reference_forward(embed_f32, gnn_f32, final_f32, adj_f32, features):
    """Pure f32 JAX reference mirroring the PyTorch module."""
    h = {nt: e for nt, e in embed_f32.items()}
    h["target"] = features
    for i, per_rel in enumerate(gnn_f32):
        if i != 0:
            h = {k: jnp.where(v >= 0, v, v * NEG_SLOPE) for k, v in h.items()}
        new_h = {nt: 0.0 for nt in NTYPES}
        for (s, e, d), (w, b) in zip(REL_ORDER, per_rel):
            new_h[d] = new_h[d] + adj_f32[e] @ (h[s] @ w.T + b)
        h = new_h
    wf, bf = final_f32
    return h["target"] @ wf.T + bf


if __name__ == "__main__":
    N_NODES = 16        # every node type has 16 nodes
    IN_SIZE = 32        # == embedding_size
    HIDDEN = 32
    OUT_SIZE = 4
    N_LAYERS = 2        # -> 2 HeteroRGCNLayer + final Linear

    ntype_dict = {"target": N_NODES, "user": N_NODES, "item": N_NODES}
    assert len(set(ntype_dict.values())) == 1, "rectangular stacks need equal node counts"
    # Every node type must receive messages, otherwise its output slab is
    # never written by the fused layer.
    assert set(NTYPES) == set(DST_TYPES)

    tile = pick_node_tile(N_NODES)
    n_pad = round_up(N_NODES, tile)
    din0_pad = round_up(IN_SIZE + 1, 128)   # +1: ones column for the folded bias
    h_pad = round_up(HIDDEN + 1, 128)
    out_pad = round_up(OUT_SIZE, 128)

    key = jax.random.PRNGKey(0)
    kit = iter(jax.random.split(key, 64))

    # learned embeddings for non-target node types (f32 masters + packed bf16)
    embed_f32 = {nt: xavier_uniform(next(kit), (num, IN_SIZE))
                 for nt, num in ntype_dict.items() if nt != "target"}
    embed_stack = jnp.zeros((len(NTYPES), n_pad, din0_pad), jnp.float32)
    for nt, e in embed_f32.items():
        embed_stack = embed_stack.at[NTYPE_IDX[nt], :e.shape[0], :IN_SIZE].set(e)
    embed_stack = embed_stack.at[:, :, IN_SIZE].set(1.0).astype(jnp.bfloat16)

    # per-relation Linear params per GNN layer (f32 masters + bf16 stacks)
    gnn_f32, gnn_wt = [], []
    din, din_pad, bias_row = IN_SIZE, din0_pad, IN_SIZE
    for _layer in range(N_LAYERS):
        per_rel = [linear_f32(next(kit), din, HIDDEN) for _ in REL_ORDER]
        gnn_f32.append(per_rel)
        gnn_wt.append(jnp.stack([pack_wt(w, b, din_pad, h_pad, bias_row)
                                 for (w, b) in per_rel]))
        din, din_pad, bias_row = HIDDEN, h_pad, HIDDEN
    final_f32 = linear_f32(next(kit), HIDDEN, OUT_SIZE)
    final_wt = pack_wt(final_f32[0], final_f32[1], h_pad, out_pad, HIDDEN)

    # dense row-normalized adjacency per relation (dst x src), padded + bf16
    adj_f32 = {}
    for (s, e, d) in CANONICAL_ETYPES:
        a = (jax.random.uniform(next(kit), (N_NODES, N_NODES)) < 0.3).astype(jnp.float32)
        adj_f32[e] = a / jnp.maximum(a.sum(axis=1, keepdims=True), 1.0)
    a_all = jnp.stack(
        [jnp.zeros((n_pad, n_pad), jnp.float32).at[:N_NODES, :N_NODES].set(adj_f32[e])
         for (_, e, _) in REL_ORDER]).astype(jnp.bfloat16)

    src_idx, dst_idx, first, last = build_schedule()
    graph = {"a_all": a_all, "src_idx": src_idx, "dst_idx": dst_idx,
             "first": first, "last": last}
    params = {"embed_stack": embed_stack, "gnn_wt": gnn_wt, "final_wt": final_wt}
    cfg = {"tile": tile, "n_pad": n_pad, "din0_pad": din0_pad,
           "in_size": IN_SIZE, "hidden": HIDDEN, "out_size": OUT_SIZE,
           "n_target": N_NODES}

    # 'target' node input features
    features = jax.random.normal(next(kit), (N_NODES, IN_SIZE), jnp.float32)

    fwd = jax.jit(lambda p, g, f: hetero_rgcn_forward(p, g, f, cfg))
    logits = fwd(params, graph, features)
    jax.block_until_ready(logits)
    assert logits.shape == (N_NODES, OUT_SIZE)

    # f32 reference (kernel uses bf16 operands -> generous tolerance)
    ref = reference_forward(embed_f32, gnn_f32, final_f32, adj_f32, features)
    np.testing.assert_allclose(np.asarray(logits, dtype=np.float32),
                               np.asarray(ref, dtype=np.float32),
                               rtol=0.1, atol=0.1)
    print("KERNEL_OK")
</pallas_src>

<mosaic_0001>
module attributes {stable_mosaic.version = 11 : i64} {
  func.func @_rgcn_layer_kernel(%arg0: i32, %arg1: i32, %arg2: i32, %arg3: memref<5xi32, #tpu.memory_space<smem>>, %arg4: memref<5xi32, #tpu.memory_space<smem>>, %arg5: memref<5xi32, #tpu.memory_space<smem>>, %arg6: memref<5xi32, #tpu.memory_space<smem>>, %arg7: memref<1x128x128xbf16, #tpu.memory_space<vmem>>, %arg8: memref<1x128x128xbf16, #tpu.memory_space<vmem>>, %arg9: memref<1x128x128xbf16, #tpu.memory_space<vmem>>, %arg10: memref<1x128x128xbf16, #tpu.memory_space<vmem>>, %arg11: memref<128x128xf32, #tpu.memory_space<vmem>>) attributes {dimension_semantics = [#tpu.dimension_semantics<parallel>, #tpu.dimension_semantics<arbitrary>, #tpu.dimension_semantics<arbitrary>], iteration_bounds = array<i64: 1, 5, 1>, scalar_prefetch = 4 : i64, scratch_operands = 1 : i64, tpu.core_type = #tpu.core_type<tc>, window_params = [{transform_indices = @transform_0, window_bounds = array<i64: 1, 128, 128>}, {transform_indices = @transform_1, window_bounds = array<i64: 1, 128, 128>}, {transform_indices = @transform_2, window_bounds = array<i64: 1, 128, 128>}, {transform_indices = @transform_3, window_bounds = array<i64: 1, 128, 128>}]} {
    %0 = arith.index_cast %arg1 : i32 to index
    %1 = memref.load %arg5[%0] : memref<5xi32, #tpu.memory_space<smem>>
    %c1_i32 = arith.constant 1 : i32
    %2 = arith.cmpi eq, %1, %c1_i32 : i32
    %c0_i32 = arith.constant 0 : i32
    %3 = arith.cmpi eq, %arg2, %c0_i32 : i32
    %4 = arith.andi %2, %3 : i1
    %5 = arith.extui %4 : i1 to i32
    %c0_i32_0 = arith.constant 0 : i32
    %6 = arith.cmpi ne, %5, %c0_i32_0 : i32
    scf.if %6 {
      %cst_17 = arith.constant 0.000000e+00 : f32
      %26 = vector.broadcast %cst_17 : f32 to vector<128x128xf32>
      %c0_18 = arith.constant 0 : index
      %c0_19 = arith.constant 0 : index
      %27 = vector.load %arg11[%c0_18, %c0_19] : memref<128x128xf32, #tpu.memory_space<vmem>>, vector<128x128xf32>
      tpu.vector_store %arg11[%c0_18, %c0_19], %26 {strides = array<i32>} : memref<128x128xf32, #tpu.memory_space<vmem>>, vector<128x128xf32>,
    } else {
    }
    %c0 = arith.constant 0 : index
    %c0_1 = arith.constant 0 : index
    %c0_2 = arith.constant 0 : index
    %7 = vector.load %arg7[%c0, %c0_1, %c0_2] : memref<1x128x128xbf16, #tpu.memory_space<vmem>>, vector<1x128x128xbf16>
    %8 = vector.shape_cast %7 : vector<1x128x128xbf16> to vector<128x128xbf16>
    %c0_3 = arith.constant 0 : index
    %c0_4 = arith.constant 0 : index
    %c0_5 = arith.constant 0 : index
    %9 = vector.load %arg9[%c0_3, %c0_4, %c0_5] : memref<1x128x128xbf16, #tpu.memory_space<vmem>>, vector<1x128x128xbf16>
    %10 = vector.shape_cast %9 : vector<1x128x128xbf16> to vector<128x128xbf16>
    %cst = arith.constant dense<0.000000e+00> : vector<128x128xf32>
    %11 = tpu.matmul %8, %10, %cst {dimension_numbers = #tpu.dot_dimension_numbers<[1], [0], [0], [1], [0, 0, 1, 1], [], []>} : vector<128x128xbf16>, vector<128x128xbf16>, vector<128x128xf32> -> vector<128x128xf32>
    %c0_6 = arith.constant 0 : index
    %c0_7 = arith.constant 0 : index
    %12 = vector.load %arg11[%c0_6, %c0_7] : memref<128x128xf32, #tpu.memory_space<vmem>>, vector<128x128xf32>
    %c0_8 = arith.constant 0 : index
    %c0_9 = arith.constant 0 : index
    %c0_10 = arith.constant 0 : index
    %13 = vector.load %arg8[%c0_8, %c0_9, %c0_10] : memref<1x128x128xbf16, #tpu.memory_space<vmem>>, vector<1x128x128xbf16>
    %14 = vector.shape_cast %13 : vector<1x128x128xbf16> to vector<128x128xbf16>
    %15 = arith.truncf %11 : vector<128x128xf32> to vector<128x128xbf16>
    %cst_11 = arith.constant dense<0.000000e+00> : vector<128x128xf32>
    %16 = tpu.matmul %14, %15, %cst_11 {dimension_numbers = #tpu.dot_dimension_numbers<[1], [0], [0], [1], [0, 0, 1, 1], [], []>} : vector<128x128xbf16>, vector<128x128xbf16>, vector<128x128xf32> -> vector<128x128xf32>
    %17 = arith.addf %12, %16 : vector<128x128xf32>
    %c0_12 = arith.constant 0 : index
    %c0_13 = arith.constant 0 : index
    %18 = vector.load %arg11[%c0_12, %c0_13] : memref<128x128xf32, #tpu.memory_space<vmem>>, vector<128x128xf32>
    tpu.vector_store %arg11[%c0_12, %c0_13], %17 {strides = array<i32>} : memref<128x128xf32, #tpu.memory_space<vmem>>, vector<128x128xf32>,
    %19 = arith.index_cast %arg1 : i32 to index
    %20 = memref.load %arg6[%19] : memref<5xi32, #tpu.memory_space<smem>>
    %c1_i32_14 = arith.constant 1 : i32
    %21 = arith.cmpi eq, %20, %c1_i32_14 : i32
    %c0_i32_15 = arith.constant 0 : i32
    %22 = arith.cmpi eq, %arg2, %c0_i32_15 : i32
    %23 = arith.andi %21, %22 : i1
    %24 = arith.extui %23 : i1 to i32
    %c0_i32_16 = arith.constant 0 : i32
    %25 = arith.cmpi ne, %24, %c0_i32_16 : i32
    scf.if %25 {
      %c0_17 = arith.constant 0 : index
      %c0_18 = arith.constant 0 : index
      %26 = vector.load %arg11[%c0_17, %c0_18] : memref<128x128xf32, #tpu.memory_space<vmem>>, vector<128x128xf32>
      %27 = tpu.iota {dimensions = array<i32: 1>} : vector<128x128xi32>
      %c32_i32 = arith.constant 32 : i32
      %28 = vector.broadcast %c32_i32 : i32 to vector<128x128xi32>
      %29 = arith.cmpi eq, %27, %28 : vector<128x128xi32>
      %cst_19 = arith.constant 1.000000e+00 : f32
      %30 = vector.broadcast %cst_19 : f32 to vector<128x128xf32>
      %31 = arith.select %29, %30, %26 : vector<128x128xi1>, vector<128x128xf32>
      %32 = arith.truncf %31 : vector<128x128xf32> to vector<128x128xbf16>
      %c0_20 = arith.constant 0 : index
      %c0_21 = arith.constant 0 : index
      %c0_22 = arith.constant 0 : index
      %33 = vector.load %arg10[%c0_20, %c0_21, %c0_22] : memref<1x128x128xbf16, #tpu.memory_space<vmem>>, vector<1x128x128xbf16>
      %34 = vector.shape_cast %33 : vector<1x128x128xbf16> to vector<128x128xbf16>
      %35 = vector.shape_cast %32 : vector<128x128xbf16> to vector<1x128x128xbf16>
      tpu.vector_store %arg10[%c0_20, %c0_21, %c0_22], %35 {strides = array<i32>} : memref<1x128x128xbf16, #tpu.memory_space<vmem>>, vector<1x128x128xbf16>,
    } else {
    }
    return
  }
  func.func @transform_0(%arg0: i32, %arg1: i32, %arg2: i32, %arg3: memref<5xi32, #tpu.memory_space<smem>>, %arg4: memref<5xi32, #tpu.memory_space<smem>>, %arg5: memref<5xi32, #tpu.memory_space<smem>>, %arg6: memref<5xi32, #tpu.memory_space<smem>>) -> (i32, i32, i32) {
    %0 = arith.index_cast %arg1 : i32 to index
    %1 = memref.load %arg3[%0] : memref<5xi32, #tpu.memory_space<smem>>
    %c0_i32 = arith.constant 0 : i32
    %c0_i32_0 = arith.constant 0 : i32
    return %1, %arg2, %c0_i32 : i32, i32, i32
  }
  func.func @transform_1(%arg0: i32, %arg1: i32, %arg2: i32, %arg3: memref<5xi32, #tpu.memory_space<smem>>, %arg4: memref<5xi32, #tpu.memory_space<smem>>, %arg5: memref<5xi32, #tpu.memory_space<smem>>, %arg6: memref<5xi32, #tpu.memory_space<smem>>) -> (i32, i32, i32) {
    %c0_i32 = arith.constant 0 : i32
    return %arg1, %arg0, %arg2 : i32, i32, i32
  }
  func.func @transform_2(%arg0: i32, %arg1: i32, %arg2: i32, %arg3: memref<5xi32, #tpu.memory_space<smem>>, %arg4: memref<5xi32, #tpu.memory_space<smem>>, %arg5: memref<5xi32, #tpu.memory_space<smem>>, %arg6: memref<5xi32, #tpu.memory_space<smem>>) -> (i32, i32, i32) {
    %c0_i32 = arith.constant 0 : i32
    %c0_i32_0 = arith.constant 0 : i32
    %c0_i32_1 = arith.constant 0 : i32
    return %arg1, %c0_i32, %c0_i32_0 : i32, i32, i32
  }
  func.func @transform_3(%arg0: i32, %arg1: i32, %arg2: i32, %arg3: memref<5xi32, #tpu.memory_space<smem>>, %arg4: memref<5xi32, #tpu.memory_space<smem>>, %arg5: memref<5xi32, #tpu.memory_space<smem>>, %arg6: memref<5xi32, #tpu.memory_space<smem>>) -> (i32, i32, i32) {
    %0 = arith.index_cast %arg1 : i32 to index
    %1 = memref.load %arg4[%0] : memref<5xi32, #tpu.memory_space<smem>>
    %c0_i32 = arith.constant 0 : i32
    %c0_i32_0 = arith.constant 0 : i32
    return %1, %arg0, %c0_i32 : i32, i32, i32
  }
}

module attributes {stable_mosaic.version = 11 : i64} {
  func.func @_rgcn_layer_kernel(%arg0: i32, %arg1: i32, %arg2: i32, %arg3: memref<5xi32, #tpu.memory_space<smem>>, %arg4: memref<5xi32, #tpu.memory_space<smem>>, %arg5: memref<5xi32, #tpu.memory_space<smem>>, %arg6: memref<5xi32, #tpu.memory_space<smem>>, %arg7: memref<1x128x128xbf16, #tpu.memory_space<vmem>>, %arg8: memref<1x128x128xbf16, #tpu.memory_space<vmem>>, %arg9: memref<1x128x128xbf16, #tpu.memory_space<vmem>>, %arg10: memref<1x128x128xbf16, #tpu.memory_space<vmem>>, %arg11: memref<128x128xf32, #tpu.memory_space<vmem>>) attributes {dimension_semantics = [#tpu.dimension_semantics<parallel>, #tpu.dimension_semantics<arbitrary>, #tpu.dimension_semantics<arbitrary>], iteration_bounds = array<i64: 1, 5, 1>, scalar_prefetch = 4 : i64, scratch_operands = 1 : i64, tpu.core_type = #tpu.core_type<tc>, window_params = [{transform_indices = @transform_0, window_bounds = array<i64: 1, 128, 128>}, {transform_indices = @transform_1, window_bounds = array<i64: 1, 128, 128>}, {transform_indices = @transform_2, window_bounds = array<i64: 1, 128, 128>}, {transform_indices = @transform_3, window_bounds = array<i64: 1, 128, 128>}]} {
    %0 = arith.index_cast %arg1 : i32 to index
    %1 = memref.load %arg5[%0] : memref<5xi32, #tpu.memory_space<smem>>
    %c1_i32 = arith.constant 1 : i32
    %2 = arith.cmpi eq, %1, %c1_i32 : i32
    %c0_i32 = arith.constant 0 : i32
    %3 = arith.cmpi eq, %arg2, %c0_i32 : i32
    %4 = arith.andi %2, %3 : i1
    %5 = arith.extui %4 : i1 to i32
    %c0_i32_0 = arith.constant 0 : i32
    %6 = arith.cmpi ne, %5, %c0_i32_0 : i32
    scf.if %6 {
      %cst_17 = arith.constant 0.000000e+00 : f32
      %26 = vector.broadcast %cst_17 : f32 to vector<128x128xf32>
      %c0_18 = arith.constant 0 : index
      %c0_19 = arith.constant 0 : index
      %27 = vector.load %arg11[%c0_18, %c0_19] : memref<128x128xf32, #tpu.memory_space<vmem>>, vector<128x128xf32>
      tpu.vector_store %arg11[%c0_18, %c0_19], %26 {strides = array<i32>} : memref<128x128xf32, #tpu.memory_space<vmem>>, vector<128x128xf32>,
    } else {
    }
    %c0 = arith.constant 0 : index
    %c0_1 = arith.constant 0 : index
    %c0_2 = arith.constant 0 : index
    %7 = vector.load %arg7[%c0, %c0_1, %c0_2] : memref<1x128x128xbf16, #tpu.memory_space<vmem>>, vector<1x128x128xbf16>
    %8 = vector.shape_cast %7 : vector<1x128x128xbf16> to vector<128x128xbf16>
    %c0_3 = arith.constant 0 : index
    %c0_4 = arith.constant 0 : index
    %c0_5 = arith.constant 0 : index
    %9 = vector.load %arg9[%c0_3, %c0_4, %c0_5] : memref<1x128x128xbf16, #tpu.memory_space<vmem>>, vector<1x128x128xbf16>
    %10 = vector.shape_cast %9 : vector<1x128x128xbf16> to vector<128x128xbf16>
    %cst = arith.constant dense<0.000000e+00> : vector<128x128xf32>
    %11 = tpu.matmul %8, %10, %cst {dimension_numbers = #tpu.dot_dimension_numbers<[1], [0], [0], [1], [0, 0, 1, 1], [], []>} : vector<128x128xbf16>, vector<128x128xbf16>, vector<128x128xf32> -> vector<128x128xf32>
    %c0_6 = arith.constant 0 : index
    %c0_7 = arith.constant 0 : index
    %12 = vector.load %arg11[%c0_6, %c0_7] : memref<128x128xf32, #tpu.memory_space<vmem>>, vector<128x128xf32>
    %c0_8 = arith.constant 0 : index
    %c0_9 = arith.constant 0 : index
    %c0_10 = arith.constant 0 : index
    %13 = vector.load %arg8[%c0_8, %c0_9, %c0_10] : memref<1x128x128xbf16, #tpu.memory_space<vmem>>, vector<1x128x128xbf16>
    %14 = vector.shape_cast %13 : vector<1x128x128xbf16> to vector<128x128xbf16>
    %15 = arith.truncf %11 : vector<128x128xf32> to vector<128x128xbf16>
    %cst_11 = arith.constant dense<0.000000e+00> : vector<128x128xf32>
    %16 = tpu.matmul %14, %15, %cst_11 {dimension_numbers = #tpu.dot_dimension_numbers<[1], [0], [0], [1], [0, 0, 1, 1], [], []>} : vector<128x128xbf16>, vector<128x128xbf16>, vector<128x128xf32> -> vector<128x128xf32>
    %17 = arith.addf %12, %16 : vector<128x128xf32>
    %c0_12 = arith.constant 0 : index
    %c0_13 = arith.constant 0 : index
    %18 = vector.load %arg11[%c0_12, %c0_13] : memref<128x128xf32, #tpu.memory_space<vmem>>, vector<128x128xf32>
    tpu.vector_store %arg11[%c0_12, %c0_13], %17 {strides = array<i32>} : memref<128x128xf32, #tpu.memory_space<vmem>>, vector<128x128xf32>,
    %19 = arith.index_cast %arg1 : i32 to index
    %20 = memref.load %arg6[%19] : memref<5xi32, #tpu.memory_space<smem>>
    %c1_i32_14 = arith.constant 1 : i32
    %21 = arith.cmpi eq, %20, %c1_i32_14 : i32
    %c0_i32_15 = arith.constant 0 : i32
    %22 = arith.cmpi eq, %arg2, %c0_i32_15 : i32
    %23 = arith.andi %21, %22 : i1
    %24 = arith.extui %23 : i1 to i32
    %c0_i32_16 = arith.constant 0 : i32
    %25 = arith.cmpi ne, %24, %c0_i32_16 : i32
    scf.if %25 {
      %c0_17 = arith.constant 0 : index
      %c0_18 = arith.constant 0 : index
      %26 = vector.load %arg11[%c0_17, %c0_18] : memref<128x128xf32, #tpu.memory_space<vmem>>, vector<128x128xf32>
      %cst_19 = arith.constant 0.000000e+00 : f32
      %27 = vector.broadcast %cst_19 : f32 to vector<128x128xf32>
      %28 = arith.cmpf oge, %26, %27 : vector<128x128xf32>
      %cst_20 = arith.constant 0.00999999977 : f32
      %29 = vector.broadcast %cst_20 : f32 to vector<128x128xf32>
      %30 = arith.mulf %26, %29 : vector<128x128xf32>
      %31 = arith.select %28, %26, %30 : vector<128x128xi1>, vector<128x128xf32>
      %32 = tpu.iota {dimensions = array<i32: 1>} : vector<128x128xi32>
      %c32_i32 = arith.constant 32 : i32
      %33 = vector.broadcast %c32_i32 : i32 to vector<128x128xi32>
      %34 = arith.cmpi eq, %32, %33 : vector<128x128xi32>
      %cst_21 = arith.constant 1.000000e+00 : f32
      %35 = vector.broadcast %cst_21 : f32 to vector<128x128xf32>
      %36 = arith.select %34, %35, %31 : vector<128x128xi1>, vector<128x128xf32>
      %37 = arith.truncf %36 : vector<128x128xf32> to vector<128x128xbf16>
      %c0_22 = arith.constant 0 : index
      %c0_23 = arith.constant 0 : index
      %c0_24 = arith.constant 0 : index
      %38 = vector.load %arg10[%c0_22, %c0_23, %c0_24] : memref<1x128x128xbf16, #tpu.memory_space<vmem>>, vector<1x128x128xbf16>
      %39 = vector.shape_cast %38 : vector<1x128x128xbf16> to vector<128x128xbf16>
      %40 = vector.shape_cast %37 : vector<128x128xbf16> to vector<1x128x128xbf16>
      tpu.vector_store %arg10[%c0_22, %c0_23, %c0_24], %40 {strides = array<i32>} : memref<1x128x128xbf16, #tpu.memory_space<vmem>>, vector<1x128x128xbf16>,
    } else {
    }
    return
  }
  func.func @transform_0(%arg0: i32, %arg1: i32, %arg2: i32, %arg3: memref<5xi32, #tpu.memory_space<smem>>, %arg4: memref<5xi32, #tpu.memory_space<smem>>, %arg5: memref<5xi32, #tpu.memory_space<smem>>, %arg6: memref<5xi32, #tpu.memory_space<smem>>) -> (i32, i32, i32) {
    %0 = arith.index_cast %arg1 : i32 to index
    %1 = memref.load %arg3[%0] : memref<5xi32, #tpu.memory_space<smem>>
    %c0_i32 = arith.constant 0 : i32
    %c0_i32_0 = arith.constant 0 : i32
    return %1, %arg2, %c0_i32 : i32, i32, i32
  }
  func.func @transform_1(%arg0: i32, %arg1: i32, %arg2: i32, %arg3: memref<5xi32, #tpu.memory_space<smem>>, %arg4: memref<5xi32, #tpu.memory_space<smem>>, %arg5: memref<5xi32, #tpu.memory_space<smem>>, %arg6: memref<5xi32, #tpu.memory_space<smem>>) -> (i32, i32, i32) {
    %c0_i32 = arith.constant 0 : i32
    return %arg1, %arg0, %arg2 : i32, i32, i32
  }
  func.func @transform_2(%arg0: i32, %arg1: i32, %arg2: i32, %arg3: memref<5xi32, #tpu.memory_space<smem>>, %arg4: memref<5xi32, #tpu.memory_space<smem>>, %arg5: memref<5xi32, #tpu.memory_space<smem>>, %arg6: memref<5xi32, #tpu.memory_space<smem>>) -> (i32, i32, i32) {
    %c0_i32 = arith.constant 0 : i32
    %c0_i32_0 = arith.constant 0 : i32
    %c0_i32_1 = arith.constant 0 : i32
    return %arg1, %c0_i32, %c0_i32_0 : i32, i32, i32
  }
  func.func @transform_3(%arg0: i32, %arg1: i32, %arg2: i32, %arg3: memref<5xi32, #tpu.memory_space<smem>>, %arg4: memref<5xi32, #tpu.memory_space<smem>>, %arg5: memref<5xi32, #tpu.memory_space<smem>>, %arg6: memref<5xi32, #tpu.memory_space<smem>>) -> (i32, i32, i32) {
    %0 = arith.index_cast %arg1 : i32 to index
    %1 = memref.load %arg4[%0] : memref<5xi32, #tpu.memory_space<smem>>
    %c0_i32 = arith.constant 0 : i32
    %c0_i32_0 = arith.constant 0 : i32
    return %1, %arg0, %c0_i32 : i32, i32, i32
  }
}

module attributes {stable_mosaic.version = 11 : i64} {
  func.func @_linear_kernel(%arg0: i32, %arg1: memref<128x128xbf16, #tpu.memory_space<vmem>>, %arg2: memref<128x128xbf16, #tpu.memory_space<vmem>>, %arg3: memref<128x128xf32, #tpu.memory_space<vmem>>) attributes {dimension_semantics = [#tpu.dimension_semantics<parallel>], iteration_bounds = array<i64: 1>, scalar_prefetch = 0 : i64, scratch_operands = 0 : i64, tpu.core_type = #tpu.core_type<tc>, window_params = [{transform_indices = @transform_0, window_bounds = array<i64: 128, 128>}, {pipeline_mode = #tpu.pipeline_mode<synchronous>, transform_indices = @transform_1, window_bounds = array<i64: 128, 128>}, {transform_indices = @transform_2, window_bounds = array<i64: 128, 128>}]} {
    %c0 = arith.constant 0 : index
    %c0_0 = arith.constant 0 : index
    %0 = vector.load %arg1[%c0, %c0_0] : memref<128x128xbf16, #tpu.memory_space<vmem>>, vector<128x128xbf16>
    %c0_1 = arith.constant 0 : index
    %c0_2 = arith.constant 0 : index
    %1 = vector.load %arg2[%c0_1, %c0_2] : memref<128x128xbf16, #tpu.memory_space<vmem>>, vector<128x128xbf16>
    %cst = arith.constant dense<0.000000e+00> : vector<128x128xf32>
    %2 = tpu.matmul %0, %1, %cst {dimension_numbers = #tpu.dot_dimension_numbers<[1], [0], [0], [1], [0, 0, 1, 1], [], []>} : vector<128x128xbf16>, vector<128x128xbf16>, vector<128x128xf32> -> vector<128x128xf32>
    %c0_3 = arith.constant 0 : index
    %c0_4 = arith.constant 0 : index
    %3 = vector.load %arg3[%c0_3, %c0_4] : memref<128x128xf32, #tpu.memory_space<vmem>>, vector<128x128xf32>
    tpu.vector_store %arg3[%c0_3, %c0_4], %2 {strides = array<i32>} : memref<128x128xf32, #tpu.memory_space<vmem>>, vector<128x128xf32>,
    return
  }
  func.func @transform_0(%arg0: i32) -> (i32, i32) {
    %c0_i32 = arith.constant 0 : i32
    %c0_i32_0 = arith.constant 0 : i32
    return %arg0, %c0_i32 : i32, i32
  }
  func.func @transform_1(%arg0: i32) -> (i32, i32) {
    %c0_i32 = arith.constant 0 : i32
    %c0_i32_0 = arith.constant 0 : i32
    %c0_i32_1 = arith.constant 0 : i32
    return %c0_i32, %c0_i32_0 : i32, i32
  }
  func.func @transform_2(%arg0: i32) -> (i32, i32) {
    %c0_i32 = arith.constant 0 : i32
    %c0_i32_0 = arith.constant 0 : i32
    return %arg0, %c0_i32 : i32, i32
  }
}

</mosaic_0001>

<llo_original>
// kernel: _lambda_.5
$region0: #{_lambda_.5}
  #allocation0 [shape = 'u32[]', space=smem, size = 0x4, offset = 0x4, fixed_abs, tag = 'smem constant byte address 0x4 - core index']
  #allocation1 [shape = 'u32[144,128]{1,0:T(1,128)}', space=vmem, size = 0x12000, scoped, tag = 'internal scratch']
  %s0 = inlined_call_operand.vmem [shape: bf16[128,128], index: 0, kind: input, shape index: {}]
  %s1 = inlined_call_operand.vmem [shape: bf16[128,128], index: 1, kind: input, shape index: {}]
  %s2 = inlined_call_operand.vmem [shape: f32[128,128], index: 2, kind: output, shape index: {}]
  %s3 = sld [smem:[#allocation0]]
  $region18: #{_lambda_.5} parent=0
    _
  %s5 = ssub.s32 1, %s3
  %s6 = scalar_select 0, %s5, %s3
  // Predicated region
  $region2: #{_lambda_.5} parent=0 // pred_check
    _
  $region3: #{_lambda_.5} parent=0 // pred_check_branch
    %8 = sbr.rel (0) target = $region5
  $region4: #{_lambda_.5} parent=0 // pred_region
    _
  $region5: #{_lambda_.5} parent=0 // pred_fallthru
    _
  // Predicated region
  $region6: #{_lambda_.5} parent=0 // pred_check
    _
  $region7: #{_lambda_.5} parent=0 // pred_check_branch
    %10 = sbr.rel (0) target = $region9
  $region8: #{_lambda_.5} parent=0 // pred_region
    _
  $region9: #{_lambda_.5} parent=0 // pred_fallthru
    _
  %v12 = vld [vmem:[%s0] sm:$0xf]
  %v13 = vld [vmem:[%s0 + $0x4] sm:$0xf]
  %v14 = vld [vmem:[%s0 + $0x8] sm:$0xf]
  %v15 = vld [vmem:[%s0 + $0xc] sm:$0xf]
  %v16 = vld [vmem:[%s0 + $0x10] sm:$0xf]
  %v17 = vld [vmem:[%s0 + $0x14] sm:$0xf]
  %v18 = vld [vmem:[%s0 + $0x18] sm:$0xf]
  %v19 = vld [vmem:[%s0 + $0x1c] sm:$0xf]
  %v20 = vld [vmem:[%s0 + $0x20] sm:$0xf]
  %v21 = vld [vmem:[%s0 + $0x24] sm:$0xf]
  %v22 = vld [vmem:[%s0 + $0x28] sm:$0xf]
  %v23 = vld [vmem:[%s0 + $0x2c] sm:$0xf]
  %v24 = vld [vmem:[%s0 + $0x30] sm:$0xf]
  %v25 = vld [vmem:[%s0 + $0x34] sm:$0xf]
  %v26 = vld [vmem:[%s0 + $0x38] sm:$0xf]
  %v27 = vld [vmem:[%s0 + $0x3c] sm:$0xf]
  %v28 = vld [vmem:[%s1] sm:$0xf]
  %v29 = vld [vmem:[%s1 + $0x4] sm:$0xf]
  %v30 = vld [vmem:[%s1 + $0x8] sm:$0xf]
  %v31 = vld [vmem:[%s1 + $0xc] sm:$0xf]
  %v32 = vld [vmem:[%s1 + $0x10] sm:$0xf]
  %v33 = vld [vmem:[%s1 + $0x14] sm:$0xf]
  %v34 = vld [vmem:[%s1 + $0x18] sm:$0xf]
  %v35 = vld [vmem:[%s1 + $0x1c] sm:$0xf]
  %v36 = vld [vmem:[%s1 + $0x20] sm:$0xf]
  %v37 = vld [vmem:[%s1 + $0x24] sm:$0xf]
  %v38 = vld [vmem:[%s1 + $0x28] sm:$0xf]
  %v39 = vld [vmem:[%s1 + $0x2c] sm:$0xf]
  %v40 = vld [vmem:[%s1 + $0x30] sm:$0xf]
  %v41 = vld [vmem:[%s1 + $0x34] sm:$0xf]
  %v42 = vld [vmem:[%s1 + $0x38] sm:$0xf]
  %v43 = vld [vmem:[%s1 + $0x3c] sm:$0xf]
  %v60 = vunpack.c.l.b16 %v12
  %v61 = vunpack.c.l.b16 %v13
  %v62 = vunpack.c.l.b16 %v14
  %v63 = vunpack.c.l.b16 %v15
  %v64 = vunpack.c.l.b16 %v16
  %v65 = vunpack.c.l.b16 %v17
  %v66 = vunpack.c.l.b16 %v18
  %v67 = vunpack.c.l.b16 %v19
  %v68 = vunpack.c.l.b16 %v20
  %v69 = vunpack.c.l.b16 %v21
  %v70 = vunpack.c.l.b16 %v22
  %v71 = vunpack.c.l.b16 %v23
  %v72 = vunpack.c.l.b16 %v24
  %v73 = vunpack.c.l.b16 %v25
  %v74 = vunpack.c.l.b16 %v26
  %v75 = vunpack.c.l.b16 %v27
  %v76 = vpack.c.b16 %v61, %v60
  %v77 = vpack.c.b16 %v63, %v62
  %v78 = vpack.c.b16 %v65, %v64
  %v79 = vpack.c.b16 %v67, %v66
  %v80 = vpack.c.b16 %v69, %v68
  %v81 = vpack.c.b16 %v71, %v70
  %v82 = vpack.c.b16 %v73, %v72
  %v83 = vpack.c.b16 %v75, %v74
  %v108 = vunpack.c.l.b16 %v28
  %v109 = vunpack.c.l.b16 %v29
  %v110 = vunpack.c.l.b16 %v30
  %v111 = vunpack.c.l.b16 %v31
  %v112 = vunpack.c.l.b16 %v32
  %v113 = vunpack.c.l.b16 %v33
  %v114 = vunpack.c.l.b16 %v34
  %v115 = vunpack.c.l.b16 %v35
  %v116 = vunpack.c.l.b16 %v36
  %v117 = vunpack.c.l.b16 %v37
  %v118 = vunpack.c.l.b16 %v38
  %v119 = vunpack.c.l.b16 %v39
  %v120 = vunpack.c.l.b16 %v40
  %v121 = vunpack.c.l.b16 %v41
  %v122 = vunpack.c.l.b16 %v42
  %v123 = vunpack.c.l.b16 %v43
  %v124 = vpack.c.b16 %v109, %v108
  %v125 = vpack.c.b16 %v111, %v110
  %v126 = vpack.c.b16 %v113, %v112
  %v127 = vpack.c.b16 %v115, %v114
  %v128 = vpack.c.b16 %v117, %v116
  %v129 = vpack.c.b16 %v119, %v118
  %v130 = vpack.c.b16 %v121, %v120
  %v131 = vpack.c.b16 %v123, %v122
  %140 = vmatprep.subr.bf16.mxu0 0
  %141 = vmatpush1.bf16.msra.mxu0 %v131
  %142 = vmatprep.subr.bf16.mxu0 0
  %143 = vmatpush1.bf16.msra.mxu0 %v130
  %144 = vmatprep.subr.bf16.mxu0 0
  %145 = vmatpush1.bf16.msra.mxu0 %v129
  %146 = vmatprep.subr.bf16.mxu0 0
  %147 = vmatpush1.bf16.msra.mxu0 %v128
  %148 = vmatprep.subr.bf16.mxu0 0
  %149 = vmatpush1.bf16.msra.mxu0 %v127
  %150 = vmatprep.subr.bf16.mxu0 0
  %151 = vmatpush1.bf16.msra.mxu0 %v126
  %152 = vmatprep.subr.bf16.mxu0 0
  %153 = vmatpush1.bf16.msra.mxu0 %v125
  %154 = vmatprep.subr.bf16.mxu0 0
  %155 = vmatpush1.bf16.msra.mxu0 %v124
  %156 = vmatprep.subr.bf16.mxu0 0
  %157 = vmatpush2.bf16.msra.mxu0 0
  %158 = vmatprep.subr.bf16.mxu0 0
  %159 = vmatpush2.bf16.msra.mxu0 0
  %160 = vmatprep.subr.bf16.mxu0 0
  %161 = vmatpush2.bf16.msra.mxu0 0
  %162 = vmatprep.subr.bf16.mxu0 0
  %163 = vmatpush2.bf16.msra.mxu0 0
  %164 = vmatprep.subr.bf16.mxu0 0
  %165 = vmatpush2.bf16.msra.mxu0 0
  %166 = vmatprep.subr.bf16.mxu0 0
  %167 = vmatpush2.bf16.msra.mxu0 0
  %168 = vmatprep.subr.bf16.mxu0 0
  %169 = vmatpush2.bf16.msra.mxu0 0
  %170 = vmatprep.subr.bf16.mxu0 0
  %171 = vmatpush2.bf16.msra.mxu0 0
  %172 = vmatprep.mubr.bf16.mxu0 0
  %173 = vmatmul.mubr.bf16.gmra.mxu0 %v76
  %v174 = vpop.f32.mrf.mxu0
  %v175 = vadd.f32 0.0, %v174
  %v176 = vpop.f32.mrf.mxu0
  %v177 = vpop.f32.mrf.mxu0
  %v178 = vadd.f32 0.0, %v177
  %v179 = vpop.f32.mrf.mxu0
  %180 = vmatprep.mubr.bf16.mxu0 0
  %181 = vmatmul.mubr.bf16.gmra.mxu0 %v77
  %v182 = vpop.f32.mrf.mxu0
  %v183 = vadd.f32 0.0, %v182
  %v184 = vpop.f32.mrf.mxu0
  %v185 = vpop.f32.mrf.mxu0
  %v186 = vadd.f32 0.0, %v185
  %v187 = vpop.f32.mrf.mxu0
  %188 = vmatprep.mubr.bf16.mxu0 0
  %189 = vmatmul.mubr.bf16.gmra.mxu0 %v78
  %v190 = vpop.f32.mrf.mxu0
  %v191 = vadd.f32 0.0, %v190
  %v192 = vpop.f32.mrf.mxu0
  %v193 = vpop.f32.mrf.mxu0
  %v194 = vadd.f32 0.0, %v193
  %v195 = vpop.f32.mrf.mxu0
  %196 = vmatprep.mubr.bf16.mxu0 0
  %197 = vmatmul.mubr.bf16.gmra.mxu0 %v79
  %v198 = vpop.f32.mrf.mxu0
  %v199 = vadd.f32 0.0, %v198
  %v200 = vpop.f32.mrf.mxu0
  %v201 = vpop.f32.mrf.mxu0
  %v202 = vadd.f32 0.0, %v201
  %v203 = vpop.f32.mrf.mxu0
  %204 = vmatprep.mubr.bf16.mxu0 0
  %205 = vmatmul.mubr.bf16.gmra.mxu0 %v80
  %v206 = vpop.f32.mrf.mxu0
  %v207 = vadd.f32 0.0, %v206
  %v208 = vpop.f32.mrf.mxu0
  %v209 = vpop.f32.mrf.mxu0
  %v210 = vadd.f32 0.0, %v209
  %v211 = vpop.f32.mrf.mxu0
  %212 = vmatprep.mubr.bf16.mxu0 0
  %213 = vmatmul.mubr.bf16.gmra.mxu0 %v81
  %v214 = vpop.f32.mrf.mxu0
  %v215 = vadd.f32 0.0, %v214
  %v216 = vpop.f32.mrf.mxu0
  %v217 = vpop.f32.mrf.mxu0
  %v218 = vadd.f32 0.0, %v217
  %v219 = vpop.f32.mrf.mxu0
  %220 = vmatprep.mubr.bf16.mxu0 0
  %221 = vmatmul.mubr.bf16.gmra.mxu0 %v82
  %v222 = vpop.f32.mrf.mxu0
  %v223 = vadd.f32 0.0, %v222
  %v224 = vpop.f32.mrf.mxu0
  %v225 = vpop.f32.mrf.mxu0
  %v226 = vadd.f32 0.0, %v225
  %v227 = vpop.f32.mrf.mxu0
  %228 = vmatprep.mubr.bf16.mxu0 0
  %229 = vmatmul.mubr.bf16.gmra.mxu0 %v83
  %v230 = vpop.f32.mrf.mxu0
  %v231 = vadd.f32 0.0, %v230
  %v232 = vpop.f32.mrf.mxu0
  %v233 = vpop.f32.mrf.mxu0
  %v234 = vadd.f32 0.0, %v233
  %v235 = vpop.f32.mrf.mxu0
  %236 = vdwg.mxu0
  %237 = vst [vmem:[%s2] sm:$0xff] %v175
  %238 = vst [vmem:[%s2 + $0x8] sm:$0xff] %v178
  %239 = vst [vmem:[%s2 + $0x10] sm:$0xff] %v183
  %240 = vst [vmem:[%s2 + $0x18] sm:$0xff] %v186
  %241 = vst [vmem:[%s2 + $0x20] sm:$0xff] %v191
  %242 = vst [vmem:[%s2 + $0x28] sm:$0xff] %v194
  %243 = vst [vmem:[%s2 + $0x30] sm:$0xff] %v199
  %244 = vst [vmem:[%s2 + $0x38] sm:$0xff] %v202
  %245 = vst [vmem:[%s2 + $0x40] sm:$0xff] %v207
  %246 = vst [vmem:[%s2 + $0x48] sm:$0xff] %v210
  %247 = vst [vmem:[%s2 + $0x50] sm:$0xff] %v215
  %248 = vst [vmem:[%s2 + $0x58] sm:$0xff] %v218
  %249 = vst [vmem:[%s2 + $0x60] sm:$0xff] %v223
  %250 = vst [vmem:[%s2 + $0x68] sm:$0xff] %v226
  %251 = vst [vmem:[%s2 + $0x70] sm:$0xff] %v231
  %252 = vst [vmem:[%s2 + $0x78] sm:$0xff] %v234
  // Predicated region
  $region10: #{_lambda_.5} parent=0 // pred_check
    _
  $region11: #{_lambda_.5} parent=0 // pred_check_branch
    %254 = sbr.rel (0) target = $region13
  $region12: #{_lambda_.5} parent=0 // pred_region
    _
  $region13: #{_lambda_.5} parent=0 // pred_fallthru
    _
  // Predicated region
  $region14: #{_lambda_.5} parent=0 // pred_check
    _
  $region15: #{_lambda_.5} parent=0 // pred_check_branch
    %256 = sbr.rel (0) target = $region17
  $region16: #{_lambda_.5} parent=0 // pred_region
    _
  $region17: #{_lambda_.5} parent=0 // pred_fallthru
    _

// kernel: _lambda_.3
$region0: #{_lambda_.3}
  #allocation0 [shape = 'u32[]', space=smem, size = 0x4, offset = 0x4, fixed_abs, tag = 'smem constant byte address 0x4 - core index']
  #allocation1 [shape = 'u32[144,128]{1,0:T(1,128)}', space=vmem, size = 0x12000, scoped, tag = 'internal scratch']
  #allocation2 [shape = 'f32[128,128]{1,0:T(8,128)}', space=vmem, size = 0x10000, scoped, tag = 'scratch operand']
  #allocation3 [shape = 's32[1]{0}', space=sflag, size = 0x4, scoped, tag = 'scoped memory for _lambda_.3']
  #allocation4 [shape = 'u8[512]{0}', space=smem, size = 0x200, scoped, tag = 'prefetched SMEM operand 0']
  #allocation5 [shape = 'u8[512]{0}', space=smem, size = 0x200, scoped, tag = 'prefetched SMEM operand 1']
  #allocation6 [shape = 'u8[512]{0}', space=smem, size = 0x200, scoped, tag = 'prefetched SMEM operand 2']
  #allocation7 [shape = 'u8[512]{0}', space=smem, size = 0x200, scoped, tag = 'prefetched SMEM operand 3']
  %s0 = inlined_call_operand.vmem [shape: s32[5], index: 0, kind: input, shape index: {}]
  %s1 = inlined_call_operand.vmem [shape: s32[5], index: 1, kind: input, shape index: {}]
  %s2 = inlined_call_operand.vmem [shape: s32[5], index: 2, kind: input, shape index: {}]
  %s3 = inlined_call_operand.vmem [shape: s32[5], index: 3, kind: input, shape index: {}]
  %s4 = inlined_call_operand.vmem [shape: bf16[3,128,128], index: 4, kind: input, shape index: {}]
  %s5 = inlined_call_operand.vmem [shape: bf16[5,128,128], index: 5, kind: input, shape index: {}]
  %s6 = inlined_call_operand.hbm [shape: bf16[5,128,128], index: 6, kind: input, shape index: {}]
  %s7 = inlined_call_operand.vmem [shape: bf16[3,128,128], index: 7, kind: output, shape index: {}]
  %s8 = sld [smem:[#allocation0]]
  $region57: #{_lambda_.3} parent=0
    _
  %s10 = ssub.s32 1, %s8
  %s11 = scalar_select 0, %s10, %s8
  %s12 = sshll.u32 %s0, 4
  %s13 = int_to_ptr.vmem [resolvable:$true] %s12
  %15 = dma.vmem_to_smem %s13, 16, [#allocation4], [#allocation3]
  %s16 = sshll.u32 %s1, 4
  %s17 = int_to_ptr.vmem [resolvable:$true] %s16
  %19 = dma.vmem_to_smem %s17, 16, [#allocation5], [#allocation3]
  %s20 = sshll.u32 %s2, 4
  %s21 = int_to_ptr.vmem [resolvable:$true] %s20
  %23 = dma.vmem_to_smem %s21, 16, [#allocation6], [#allocation3]
  %s24 = sshll.u32 %s3, 4
  %s25 = int_to_ptr.vmem [resolvable:$true] %s24
  %27 = dma.vmem_to_smem %s25, 16, [#allocation7], [#allocation3]
  %28 = dma.done [#allocation3], 64
  %29 = sfence
  $region1: #{_lambda_.3} parent=0
    #allocation8 [shape = 'u8[65536]{0}', space=vmem, size = 0x10000, scoped, tag = 'input window, operand 6']
    #allocation9 [shape = 's32[2]{0}', space=sflag, size = 0x8, scoped, tag = 'scoped memory for _lambda_.3']
    %30 = vsyncpa [#allocation9], 0
    %s31 = scalar_lea.sflag [#allocation9], 1
    %32 = vsyncpa %s31, 0
    loop: start=0, step=1, limit=7
    $region2: #{_lambda_.3} parent=1 // loop_pre_header
      _
    $region3: #{_lambda_.3} parent=1 // loop_header
      %s34 = sphi 0, %s38
      %p35 = scmp.ge.s32.totalorder %s34, 7
      %s41 = sphi 0, %s60
      %s42 = sphi 0, %s56
      %s43 = sphi 0, %s52
      %s44 = sphi 0, %s41
      %s45 = sphi 0, %s42
      %s46 = sphi 0, %s43
      %s47 = sphi 0, %s44
      %s48 = sphi 0, %s45
      %s49 = sphi 0, %s46
      %s67 = sphi 0, %s69
      %s70 = sphi 0, %s67
      %s71 = sphi 0, %s70
      %s87 = sphi 0, %s71
      %s97 = sphi 0, %s99
      %s100 = sphi 0, %s97
      %s101 = sphi 0, %s100
      %s117 = sphi 0, %s101
      %s123 = sphi 0, %s125
      %s126 = sphi 0, %s123
      %s127 = sphi 0, %s126
      %s143 = sphi 0, %s127
      %s153 = sphi 0, %s155
      %s156 = sphi 0, %s153
      %s157 = sphi 0, %s156
      %s173 = sphi 0, %s157
    $region4: #{_lambda_.3} parent=1 // loop_header_branch
      %37 = sbr.rel (%p35) target = $region8
    $region5: #{_lambda_.3} parent=1 // loop_body
      %s39 = ssub.s32 %s34, 1
      %s40 = ssub.s32 %s34, 2
      %s50 = sadd.s32 1, %s43
      %p51 = scmp.ge.s32.totalorder %s50, 1
      %s52 = scalar_select %p51, 0, %s50
      %s53 = sadd.s32 1, %s42
      %s54 = scalar_select %p51, %s53, %s42
      %p55 = scmp.ge.s32.totalorder %s54, 5
      %s56 = scalar_select %p55, 0, %s54
      %s57 = sadd.s32 1, %s41
      %s58 = scalar_select %p55, %s57, %s41
      %p59 = scmp.ge.s32.totalorder %s58, 1
      %s60 = scalar_select %p59, 0, %s58
      %s61 = sld [smem:[#allocation4 + %s42]]
      %s62 = sld [smem:[#allocation4 + %s56]]
      %s63 = ssub.s32 %s61, %s62
      %s64 = ssub.s32 %s43, %s52
      %s65 = sor.u32 %s63, %s64
      %p66 = scmp.eq.s32.totalorder %s65, 0
      %s68 = sadd.s32 %s67, 1
      %s69 = scalar_select %p66, %s67, %s68
      %p72 = pneg %p66
      %p73 = scmp.eq.s32.totalorder %s34, 4
      %p74 = por %p72, %p73
      %p75 = scmp.ne.s32.totalorder %s67, %s70
      %p76 = scmp.eq.s32.totalorder %s34, 0
      %p77 = por %p75, %p76
      %p78 = scmp.ne.s32.totalorder %s67, %s70
      %p79 = scmp.eq.s32.totalorder %s39, 4
      %p80 = por %p78, %p79
      %p81 = scmp.ne.s32.totalorder %s70, %s71
      %p82 = scmp.eq.s32.totalorder %s39, 0
      %p83 = por %p81, %p82
      %p84 = scmp.ne.s32.totalorder %s70, %s71
      %p85 = scmp.eq.s32.totalorder %s40, 4
      %p86 = por %p84, %p85
      %p88 = scmp.ne.s32.totalorder %s71, %s87
      %p89 = scmp.eq.s32.totalorder %s40, 0
      %p90 = por %p88, %p89
      %s91 = ssub.s32 %s42, %s56
      %s92 = ssub.s32 %s41, %s60
      %s93 = sor.u32 %s91, %s92
      %s94 = ssub.s32 %s43, %s52
      %s95 = sor.u32 %s93, %s94
      %p96 = scmp.eq.s32.totalorder %s95, 0
      %s98 = sadd.s32 %s97, 1
      %s99 = scalar_select %p96, %s97, %s98
      %p102 = pneg %p96
      %p103 = scmp.eq.s32.totalorder %s34, 4
      %p104 = por %p102, %p103
      %p105 = scmp.ne.s32.totalorder %s97, %s100
      %p106 = scmp.eq.s32.totalorder %s34, 0
      %p107 = por %p105, %p106
      %p108 = scmp.ne.s32.totalorder %s97, %s100
      %p109 = scmp.eq.s32.totalorder %s39, 4
      %p110 = por %p108, %p109
      %p111 = scmp.ne.s32.totalorder %s100, %s101
      %p112 = scmp.eq.s32.totalorder %s39, 0
      %p113 = por %p111, %p112
      %p114 = scmp.ne.s32.totalorder %s100, %s101
      %p115 = scmp.eq.s32.totalorder %s40, 4
      %p116 = por %p114, %p115
      %p118 = scmp.ne.s32.totalorder %s101, %s117
      %p119 = scmp.eq.s32.totalorder %s40, 0
      %p120 = por %p118, %p119
      %s121 = ssub.s32 %s42, %s56
      %p122 = scmp.eq.s32.totalorder %s121, 0
      %s124 = sadd.s32 %s123, 1
      %s125 = scalar_select %p122, %s123, %s124
      %p128 = pneg %p122
      %p129 = scmp.eq.s32.totalorder %s34, 4
      %p130 = por %p128, %p129
      %p131 = scmp.ne.s32.totalorder %s123, %s126
      %p132 = scmp.eq.s32.totalorder %s34, 0
      %p133 = por %p131, %p132
      %p134 = scmp.ne.s32.totalorder %s123, %s126
      %p135 = scmp.eq.s32.totalorder %s39, 4
      %p136 = por %p134, %p135
      %p137 = scmp.ne.s32.totalorder %s126, %s127
      %p138 = scmp.eq.s32.totalorder %s39, 0
      %p139 = por %p137, %p138
      %p140 = scmp.ne.s32.totalorder %s126, %s127
      %p141 = scmp.eq.s32.totalorder %s40, 4
      %p142 = por %p140, %p141
      %p144 = scmp.ne.s32.totalorder %s127, %s143
      %p145 = scmp.eq.s32.totalorder %s40, 0
      %p146 = por %p144, %p145
      %s147 = sld [smem:[#allocation5 + %s42]]
      %s148 = sld [smem:[#allocation5 + %s56]]
      %s149 = ssub.s32 %s147, %s148
      %s150 = ssub.s32 %s41, %s60
      %s151 = sor.u32 %s149, %s150
      %p152 = scmp.eq.s32.totalorder %s151, 0
      %s154 = sadd.s32 %s153, 1
      %s155 = scalar_select %p152, %s153, %s154
      %p158 = pneg %p152
      %p159 = scmp.eq.s32.totalorder %s34, 4
      %p160 = por %p158, %p159
      %p161 = scmp.ne.s32.totalorder %s153, %s156
      %p162 = scmp.eq.s32.totalorder %s34, 0
      %p163 = por %p161, %p162
      %p164 = scmp.ne.s32.totalorder %s153, %s156
      %p165 = scmp.eq.s32.totalorder %s39, 4
      %p166 = por %p164, %p165
      %p167 = scmp.ne.s32.totalorder %s156, %s157
      %p168 = scmp.eq.s32.totalorder %s39, 0
      %p169 = por %p167, %p168
      %p170 = scmp.ne.s32.totalorder %s156, %s157
      %p171 = scmp.eq.s32.totalorder %s40, 4
      %p172 = por %p170, %p171
      %p174 = scmp.ne.s32.totalorder %s157, %s173
      %p175 = scmp.eq.s32.totalorder %s40, 0
      %p176 = por %p174, %p175
      %p177 = scmp.le.s32.totalorder 1, %s34
      %p178 = scmp.lt.s32.totalorder %s34, 6
      %p179 = pnand %p177, %p178
      %p180 = pneg %p179
      // Predicated region
      $region9: #{_lambda_.3} parent=5 // pred_check
        _
      $region10: #{_lambda_.3} parent=5 // pred_check_branch
        %182 = sbr.rel (%p179) target = $region12
      $region11: #{_lambda_.3} parent=5 // pred_region
        %s183 = ssub.s32 %s34, 1
      $region12: #{_lambda_.3} parent=5 // pred_fallthru
        _
      %p184 = scmp.lt.s32.totalorder %s34, 5
      // Predicated region
      $region13: #{_lambda_.3} parent=5 // pred_check
        %p185 = pneg %p184
      $region14: #{_lambda_.3} parent=5 // pred_check_branch
        %187 = sbr.rel (%p185) target = $region16
      $region15: #{_lambda_.3} parent=5 // pred_region
        // Predicated region
        $region17: #{_lambda_.3} parent=15 // pred_check
          %p188 = pneg %p77
        $region18: #{_lambda_.3} parent=15 // pred_check_branch
          %190 = sbr.rel (%p188) target = $region20
        $region19: #{_lambda_.3} parent=15 // pred_region
          %s191 = sld [smem:[#allocation4 + %s42]]
          %s192 = smul.u32 16, %s43
          %p193 = scmp.lt.s32.totalorder %s191, 2
          %s194 = scalar_select %p193, %s191, 2
          %p195 = scmp.lt.s32.totalorder %s192, 15
          %s196 = scalar_select %p195, %s192, 15
          %s197 = smul.addr %s194, 16
          %s198 = sadd.s32 %s196, %s197
          %s199 = smul.addr %s198, 4
          %s200 = scalar_lea.vmem %s4, %s199
          %s201 = sld [smem:[#allocation4 + %s42]]
          %s202 = smul.u32 16, %s43
        $region20: #{_lambda_.3} parent=15 // pred_fallthru
          _
        // Predicated region
        $region21: #{_lambda_.3} parent=15 // pred_check
          %p203 = pneg %p107
        $region22: #{_lambda_.3} parent=15 // pred_check_branch
          %205 = sbr.rel (%p203) target = $region24
        $region23: #{_lambda_.3} parent=15 // pred_region
          %s206 = smul.u32 16, %s41
          %p207 = scmp.lt.s32.totalorder %s42, 4
          %s208 = scalar_select %p207, %s42, 4
          %p209 = scmp.lt.s32.totalorder %s206, 15
          %s210 = scalar_select %p209, %s206, 15
          %p211 = scmp.lt.s32.totalorder %s43, 0
          %s212 = scalar_select %p211, %s43, 0
          %s213 = sadd.s32 %s212, %s210
          %s214 = smul.addr %s208, 16
          %s215 = sadd.s32 %s213, %s214
          %s216 = smul.addr %s215, 4
          %s217 = scalar_lea.vmem %s5, %s216
          %s218 = smul.u32 16, %s41
        $region24: #{_lambda_.3} parent=15 // pred_fallthru
          _
        // Predicated region
        $region25: #{_lambda_.3} parent=15 // pred_check
          %p219 = pneg %p133
        $region26: #{_lambda_.3} parent=15 // pred_check_branch
          %221 = sbr.rel (%p219) target = $region28
        $region27: #{_lambda_.3} parent=15 // pred_region
          %s222 = sand.u32 %s123, 1
          %s223 = scalar_lea.sflag [#allocation9], %s222
          %s224 = sand.u32 %s123, 1
          %s225 = smul.addr %s224, 64
          %s226 = scalar_lea.vmem [#allocation8], %s225
          %s228 = ssub.s32 1024, 1024
          %229 = vsyncadd %s223, %s228
          %s230 = smul.addr %s42, 16
          %s231 = smul.addr %s230, 64
          %s232 = scalar_lea.hbm %s6, %s231
          %s233 = sshll.u32 %s226, 4
          %s234 = int_to_ptr.vmem [resolvable:$true] %s233
          %239 = dma.hbm_to_vmem [thread:$0]  %s232, 1024, %s234, %s223, 64, 64, 4
        $region28: #{_lambda_.3} parent=15 // pred_fallthru
          _
      $region16: #{_lambda_.3} parent=5 // pred_fallthru
        _
      %p240 = scmp.le.s32.totalorder 1, %s34
      %p241 = scmp.lt.s32.totalorder %s34, 6
      %p242 = pnand %p240, %p241
      %p243 = pneg %p242
      // Predicated region
      $region29: #{_lambda_.3} parent=5 // pred_check
        _
      $region30: #{_lambda_.3} parent=5 // pred_check_branch
        %245 = sbr.rel (%p242) target = $region32
      $region31: #{_lambda_.3} parent=5 // pred_region
        %s246 = ssub.s32 %s34, 1
        %s247 = sand.u32 %s126, 1
        %s248 = scalar_lea.sflag [#allocation9], %s247
        %s249 = sand.u32 %s126, 1
        %s250 = smul.addr %s249, 64
        %s251 = scalar_lea.vmem [#allocation8], %s250
        // Predicated region
        $region33: #{_lambda_.3} parent=31 // pred_check
          %p252 = pneg %p139
        $region34: #{_lambda_.3} parent=31 // pred_check_branch
          %254 = sbr.rel (%p252) target = $region36
        $region35: #{_lambda_.3} parent=31 // pred_region
          %255 = dma.done %s248, 1024
        $region36: #{_lambda_.3} parent=31 // pred_fallthru
          _
        %s256 = sld [smem:[#allocation4 + %s45]]
        %s257 = smul.u32 16, %s46
        %p258 = scmp.lt.s32.totalorder %s256, 2
        %s259 = scalar_select %p258, %s256, 2
        %p260 = scmp.lt.s32.totalorder %s257, 15
        %s261 = scalar_select %p260, %s257, 15
        %s262 = smul.addr %s259, 16
        %s263 = sadd.s32 %s261, %s262
        %s264 = smul.addr %s263, 4
        %s265 = scalar_lea.vmem %s4, %s264
        %p266 = pneg %p83
        %p267 = pneg %p80
        %s268 = smul.u32 16, %s44
        %p269 = scmp.lt.s32.totalorder %s45, 4
        %s270 = scalar_select %p269, %s45, 4
        %p271 = scmp.lt.s32.totalorder %s268, 15
        %s272 = scalar_select %p271, %s268, 15
        %p273 = scmp.lt.s32.totalorder %s46, 0
        %s274 = scalar_select %p273, %s46, 0
        %s275 = sadd.s32 %s274, %s272
        %s276 = smul.addr %s270, 16
        %s277 = sadd.s32 %s275, %s276
        %s278 = smul.addr %s277, 4
        %s279 = scalar_lea.vmem %s5, %s278
        %p280 = pneg %p113
        %p281 = pneg %p110
        %s282 = sand.u32 %s126, 1
        %s283 = scalar_lea.sflag [#allocation9], %s282
        %s284 = sand.u32 %s126, 1
        %s285 = smul.addr %s284, 64
        %s286 = scalar_lea.vmem [#allocation8], %s285
        %p287 = pneg %p139
        %p288 = pneg %p136
        %p289 = pneg %p169
        %p290 = pneg %p166
        %s291 = sld [smem:[#allocation5 + %s45]]
        %s292 = smul.u32 16, %s44
        %p293 = scmp.lt.s32.totalorder %s291, 2
        %s294 = scalar_select %p293, %s291, 2
        %p295 = scmp.lt.s32.totalorder %s292, 15
        %s296 = scalar_select %p295, %s292, 15
        %s297 = smul.addr %s294, 16
        %s298 = sadd.s32 %s296, %s297
        %s299 = smul.addr %s298, 4
        %s300 = scalar_lea.vmem %s7, %s299
        %s301 = sld [smem:[#allocation4 + %s45]]
        %s302 = smul.u32 16, %s46
        %p303 = scmp.lt.s32.totalorder %s301, 2
        %s304 = scalar_select %p303, %s301, 2
        %p305 = scmp.lt.s32.totalorder %s302, 15
        %s306 = scalar_select %p305, %s302, 15
        %s307 = smul.addr %s304, 16
        %s308 = sadd.s32 %s306, %s307
        %s309 = smul.addr %s308, 4
        %s310 = scalar_lea.vmem %s4, %s309
        %s311 = sld [smem:[#allocation4 + %s45]]
        %s312 = smul.u32 16, %s46
        %s313 = smul.u32 16, %s44
        %p314 = scmp.lt.s32.totalorder %s45, 4
        %s315 = scalar_select %p314, %s45, 4
        %p316 = scmp.lt.s32.totalorder %s313, 15
        %s317 = scalar_select %p316, %s313, 15
        %p318 = scmp.lt.s32.totalorder %s46, 0
        %s319 = scalar_select %p318, %s46, 0
        %s320 = sadd.s32 %s319, %s317
        %s321 = smul.addr %s315, 16
        %s322 = sadd.s32 %s320, %s321
        %s323 = smul.addr %s322, 4
        %s324 = scalar_lea.vmem %s5, %s323
        %s325 = smul.u32 16, %s44
        %s326 = sld [smem:[#allocation5 + %s45]]
        %s327 = smul.u32 16, %s44
        %p328 = scmp.lt.s32.totalorder %s326, 2
        %s329 = scalar_select %p328, %s326, 2
        %p330 = scmp.lt.s32.totalorder %s327, 15
        %s331 = scalar_select %p330, %s327, 15
        %s332 = smul.addr %s329, 16
        %s333 = sadd.s32 %s331, %s332
        %s334 = smul.addr %s333, 4
        %s335 = scalar_lea.vmem %s7, %s334
        %s336 = sld [smem:[#allocation5 + %s45]]
        %s337 = smul.u32 16, %s44
        %s339 = sld [smem:[#allocation6 + %s45]]
        %p340 = scmp.eq.s32.totalorder %s339, 1
        %p341 = scmp.eq.s32.totalorder %s46, 0
        %p342 = pnand %p340, %p341
        %p343 = pneg %p342
        // Predicated region
        $region37: #{_lambda_.3} parent=31 // pred_check
          _
        $region38: #{_lambda_.3} parent=31 // pred_check_branch
          %345 = sbr.rel (%p342) target = $region40
        $region39: #{_lambda_.3} parent=31 // pred_region
          %346 = vst [vmem:[#allocation2] sm:$0xff] 0.0
          %347 = vst [vmem:[#allocation2 + $0x8] sm:$0xff] 0.0
          %348 = vst [vmem:[#allocation2 + $0x10] sm:$0xff] 0.0
          %349 = vst [vmem:[#allocation2 + $0x18] sm:$0xff] 0.0
          %350 = vst [vmem:[#allocation2 + $0x20] sm:$0xff] 0.0
          %351 = vst [vmem:[#allocation2 + $0x28] sm:$0xff] 0.0
          %352 = vst [vmem:[#allocation2 + $0x30] sm:$0xff] 0.0
          %353 = vst [vmem:[#allocation2 + $0x38] sm:$0xff] 0.0
          %354 = vst [vmem:[#allocation2 + $0x40] sm:$0xff] 0.0
          %355 = vst [vmem:[#allocation2 + $0x48] sm:$0xff] 0.0
          %356 = vst [vmem:[#allocation2 + $0x50] sm:$0xff] 0.0
          %357 = vst [vmem:[#allocation2 + $0x58] sm:$0xff] 0.0
          %358 = vst [vmem:[#allocation2 + $0x60] sm:$0xff] 0.0
          %359 = vst [vmem:[#allocation2 + $0x68] sm:$0xff] 0.0
          %360 = vst [vmem:[#allocation2 + $0x70] sm:$0xff] 0.0
          %361 = vst [vmem:[#allocation2 + $0x78] sm:$0xff] 0.0
        $region40: #{_lambda_.3} parent=31 // pred_fallthru
          _
        %v362 = vld [vmem:[%s310] sm:$0xf]
        %v363 = vld [vmem:[%s310 + $0x4] sm:$0xf]
        %v364 = vld [vmem:[%s310 + $0x8] sm:$0xf]
        %v365 = vld [vmem:[%s310 + $0xc] sm:$0xf]
        %v366 = vld [vmem:[%s310 + $0x10] sm:$0xf]
        %v367 = vld [vmem:[%s310 + $0x14] sm:$0xf]
        %v368 = vld [vmem:[%s310 + $0x18] sm:$0xf]
        %v369 = vld [vmem:[%s310 + $0x1c] sm:$0xf]
        %v370 = vld [vmem:[%s310 + $0x20] sm:$0xf]
        %v371 = vld [vmem:[%s310 + $0x24] sm:$0xf]
        %v372 = vld [vmem:[%s310 + $0x28] sm:$0xf]
        %v373 = vld [vmem:[%s310 + $0x2c] sm:$0xf]
        %v374 = vld [vmem:[%s310 + $0x30] sm:$0xf]
        %v375 = vld [vmem:[%s310 + $0x34] sm:$0xf]
        %v376 = vld [vmem:[%s310 + $0x38] sm:$0xf]
        %v377 = vld [vmem:[%s310 + $0x3c] sm:$0xf]
        %v378 = vld [vmem:[%s251] sm:$0xf]
        %v379 = vld [vmem:[%s251 + $0x4] sm:$0xf]
        %v380 = vld [vmem:[%s251 + $0x8] sm:$0xf]
        %v381 = vld [vmem:[%s251 + $0xc] sm:$0xf]
        %v382 = vld [vmem:[%s251 + $0x10] sm:$0xf]
        %v383 = vld [vmem:[%s251 + $0x14] sm:$0xf]
        %v384 = vld [vmem:[%s251 + $0x18] sm:$0xf]
        %v385 = vld [vmem:[%s251 + $0x1c] sm:$0xf]
        %v386 = vld [vmem:[%s251 + $0x20] sm:$0xf]
        %v387 = vld [vmem:[%s251 + $0x24] sm:$0xf]
        %v388 = vld [vmem:[%s251 + $0x28] sm:$0xf]
        %v389 = vld [vmem:[%s251 + $0x2c] sm:$0xf]
        %v390 = vld [vmem:[%s251 + $0x30] sm:$0xf]
        %v391 = vld [vmem:[%s251 + $0x34] sm:$0xf]
        %v392 = vld [vmem:[%s251 + $0x38] sm:$0xf]
        %v393 = vld [vmem:[%s251 + $0x3c] sm:$0xf]
        %v410 = vunpack.c.l.b16 %v362
        %v411 = vunpack.c.l.b16 %v363
        %v412 = vunpack.c.l.b16 %v364
        %v413 = vunpack.c.l.b16 %v365
        %v414 = vunpack.c.l.b16 %v366
        %v415 = vunpack.c.l.b16 %v367
        %v416 = vunpack.c.l.b16 %v368
        %v417 = vunpack.c.l.b16 %v369
        %v418 = vunpack.c.l.b16 %v370
        %v419 = vunpack.c.l.b16 %v371
        %v420 = vunpack.c.l.b16 %v372
        %v421 = vunpack.c.l.b16 %v373
        %v422 = vunpack.c.l.b16 %v374
        %v423 = vunpack.c.l.b16 %v375
        %v424 = vunpack.c.l.b16 %v376
        %v425 = vunpack.c.l.b16 %v377
        %v426 = vpack.c.b16 %v411, %v410
        %v427 = vpack.c.b16 %v413, %v412
        %v428 = vpack.c.b16 %v415, %v414
        %v429 = vpack.c.b16 %v417, %v416
        %v430 = vpack.c.b16 %v419, %v418
        %v431 = vpack.c.b16 %v421, %v420
        %v432 = vpack.c.b16 %v423, %v422
        %v433 = vpack.c.b16 %v425, %v424
        %v458 = vunpack.c.l.b16 %v378
        %v459 = vunpack.c.l.b16 %v379
        %v460 = vunpack.c.l.b16 %v380
        %v461 = vunpack.c.l.b16 %v381
        %v462 = vunpack.c.l.b16 %v382
        %v463 = vunpack.c.l.b16 %v383
        %v464 = vunpack.c.l.b16 %v384
        %v465 = vunpack.c.l.b16 %v385
        %v466 = vunpack.c.l.b16 %v386
        %v467 = vunpack.c.l.b16 %v387
        %v468 = vunpack.c.l.b16 %v388
        %v469 = vunpack.c.l.b16 %v389
        %v470 = vunpack.c.l.b16 %v390
        %v471 = vunpack.c.l.b16 %v391
        %v472 = vunpack.c.l.b16 %v392
        %v473 = vunpack.c.l.b16 %v393
        %v474 = vpack.c.b16 %v459, %v458
        %v475 = vpack.c.b16 %v461, %v460
        %v476 = vpack.c.b16 %v463, %v462
        %v477 = vpack.c.b16 %v465, %v464
        %v478 = vpack.c.b16 %v467, %v466
        %v479 = vpack.c.b16 %v469, %v468
        %v480 = vpack.c.b16 %v471, %v470
        %v481 = vpack.c.b16 %v473, %v472
        %490 = vmatprep.subr.bf16.mxu0 0
        %491 = vmatpush1.bf16.msra.mxu0 %v481
        %492 = vmatprep.subr.bf16.mxu0 0
        %493 = vmatpush1.bf16.msra.mxu0 %v480
        %494 = vmatprep.subr.bf16.mxu0 0
        %495 = vmatpush1.bf16.msra.mxu0 %v479
        %496 = vmatprep.subr.bf16.mxu0 0
        %497 = vmatpush1.bf16.msra.mxu0 %v478
        %498 = vmatprep.subr.bf16.mxu0 0
        %499 = vmatpush1.bf16.msra.mxu0 %v477
        %500 = vmatprep.subr.bf16.mxu0 0
        %501 = vmatpush1.bf16.msra.mxu0 %v476
        %502 = vmatprep.subr.bf16.mxu0 0
        %503 = vmatpush1.bf16.msra.mxu0 %v475
        %504 = vmatprep.subr.bf16.mxu0 0
        %505 = vmatpush1.bf16.msra.mxu0 %v474
        %506 = vmatprep.subr.bf16.mxu0 0
        %507 = vmatpush2.bf16.msra.mxu0 0
        %508 = vmatprep.subr.bf16.mxu0 0
        %509 = vmatpush2.bf16.msra.mxu0 0
        %510 = vmatprep.subr.bf16.mxu0 0
        %511 = vmatpush2.bf16.msra.mxu0 0
        %512 = vmatprep.subr.bf16.mxu0 0
        %513 = vmatpush2.bf16.msra.mxu0 0
        %514 = vmatprep.subr.bf16.mxu0 0
        %515 = vmatpush2.bf16.msra.mxu0 0
        %516 = vmatprep.subr.bf16.mxu0 0
        %517 = vmatpush2.bf16.msra.mxu0 0
        %518 = vmatprep.subr.bf16.mxu0 0
        %519 = vmatpush2.bf16.msra.mxu0 0
        %520 = vmatprep.subr.bf16.mxu0 0
        %521 = vmatpush2.bf16.msra.mxu0 0
        %522 = vmatprep.mubr.bf16.mxu0 0
        %523 = vmatmul.mubr.bf16.gmra.mxu0 %v426
        %v524 = vpop.f32.mrf.mxu0
        %v525 = vadd.f32 0.0, %v524
        %v526 = vpop.f32.mrf.mxu0
        %v527 = vpop.f32.mrf.mxu0
        %v528 = vadd.f32 0.0, %v527
        %v529 = vpop.f32.mrf.mxu0
        %530 = vmatprep.mubr.bf16.mxu0 0
        %531 = vmatmul.mubr.bf16.gmra.mxu0 %v427
        %v532 = vpop.f32.mrf.mxu0
        %v533 = vadd.f32 0.0, %v532
        %v534 = vpop.f32.mrf.mxu0
        %v535 = vpop.f32.mrf.mxu0
        %v536 = vadd.f32 0.0, %v535
        %v537 = vpop.f32.mrf.mxu0
        %538 = vmatprep.mubr.bf16.mxu0 0
        %539 = vmatmul.mubr.bf16.gmra.mxu0 %v428
        %v540 = vpop.f32.mrf.mxu0
        %v541 = vadd.f32 0.0, %v540
        %v542 = vpop.f32.mrf.mxu0
        %v543 = vpop.f32.mrf.mxu0
        %v544 = vadd.f32 0.0, %v543
        %v545 = vpop.f32.mrf.mxu0
        %546 = vmatprep.mubr.bf16.mxu0 0
        %547 = vmatmul.mubr.bf16.gmra.mxu0 %v429
        %v548 = vpop.f32.mrf.mxu0
        %v549 = vadd.f32 0.0, %v548
        %v550 = vpop.f32.mrf.mxu0
        %v551 = vpop.f32.mrf.mxu0
        %v552 = vadd.f32 0.0, %v551
        %v553 = vpop.f32.mrf.mxu0
        %554 = vmatprep.mubr.bf16.mxu0 0
        %555 = vmatmul.mubr.bf16.gmra.mxu0 %v430
        %v556 = vpop.f32.mrf.mxu0
        %v557 = vadd.f32 0.0, %v556
        %v558 = vpop.f32.mrf.mxu0
        %v559 = vpop.f32.mrf.mxu0
        %v560 = vadd.f32 0.0, %v559
        %v561 = vpop.f32.mrf.mxu0
        %562 = vmatprep.mubr.bf16.mxu0 0
        %563 = vmatmul.mubr.bf16.gmra.mxu0 %v431
        %v564 = vpop.f32.mrf.mxu0
        %v565 = vadd.f32 0.0, %v564
        %v566 = vpop.f32.mrf.mxu0
        %v567 = vpop.f32.mrf.mxu0
        %v568 = vadd.f32 0.0, %v567
        %v569 = vpop.f32.mrf.mxu0
        %570 = vmatprep.mubr.bf16.mxu0 0
        %571 = vmatmul.mubr.bf16.gmra.mxu0 %v432
        %v572 = vpop.f32.mrf.mxu0
        %v573 = vadd.f32 0.0, %v572
        %v574 = vpop.f32.mrf.mxu0
        %v575 = vpop.f32.mrf.mxu0
        %v576 = vadd.f32 0.0, %v575
        %v577 = vpop.f32.mrf.mxu0
        %578 = vmatprep.mubr.bf16.mxu0 0
        %579 = vmatmul.mubr.bf16.gmra.mxu0 %v433
        %v580 = vpop.f32.mrf.mxu0
        %v581 = vadd.f32 0.0, %v580
        %v582 = vpop.f32.mrf.mxu0
        %v583 = vpop.f32.mrf.mxu0
        %v584 = vadd.f32 0.0, %v583
        %v585 = vpop.f32.mrf.mxu0
        %586 = vdwg.mxu0
        %v587 = vld [vmem:[#allocation2] sm:$0xff]
        %v588 = vld [vmem:[#allocation2 + $0x8] sm:$0xff]
        %v589 = vld [vmem:[#allocation2 + $0x10] sm:$0xff]
        %v590 = vld [vmem:[#allocation2 + $0x18] sm:$0xff]
        %v591 = vld [vmem:[#allocation2 + $0x20] sm:$0xff]
        %v592 = vld [vmem:[#allocation2 + $0x28] sm:$0xff]
        %v593 = vld [vmem:[#allocation2 + $0x30] sm:$0xff]
        %v594 = vld [vmem:[#allocation2 + $0x38] sm:$0xff]
        %v595 = vld [vmem:[#allocation2 + $0x40] sm:$0xff]
        %v596 = vld [vmem:[#allocation2 + $0x48] sm:$0xff]
        %v597 = vld [vmem:[#allocation2 + $0x50] sm:$0xff]
        %v598 = vld [vmem:[#allocation2 + $0x58] sm:$0xff]
        %v599 = vld [vmem:[#allocation2 + $0x60] sm:$0xff]
        %v600 = vld [vmem:[#allocation2 + $0x68] sm:$0xff]
        %v601 = vld [vmem:[#allocation2 + $0x70] sm:$0xff]
        %v602 = vld [vmem:[#allocation2 + $0x78] sm:$0xff]
        %v603 = vld [vmem:[%s324] sm:$0xf]
        %v604 = vld [vmem:[%s324 + $0x4] sm:$0xf]
        %v605 = vld [vmem:[%s324 + $0x8] sm:$0xf]
        %v606 = vld [vmem:[%s324 + $0xc] sm:$0xf]
        %v607 = vld [vmem:[%s324 + $0x10] sm:$0xf]
        %v608 = vld [vmem:[%s324 + $0x14] sm:$0xf]
        %v609 = vld [vmem:[%s324 + $0x18] sm:$0xf]
        %v610 = vld [vmem:[%s324 + $0x1c] sm:$0xf]
        %v611 = vld [vmem:[%s324 + $0x20] sm:$0xf]
        %v612 = vld [vmem:[%s324 + $0x24] sm:$0xf]
        %v613 = vld [vmem:[%s324 + $0x28] sm:$0xf]
        %v614 = vld [vmem:[%s324 + $0x2c] sm:$0xf]
        %v615 = vld [vmem:[%s324 + $0x30] sm:$0xf]
        %v616 = vld [vmem:[%s324 + $0x34] sm:$0xf]
        %v617 = vld [vmem:[%s324 + $0x38] sm:$0xf]
        %v618 = vld [vmem:[%s324 + $0x3c] sm:$0xf]
        %v619 = vpack.c.bf16 %v528, %v525
        %v620 = vpack.c.bf16 %v536, %v533
        %v621 = vpack.c.bf16 %v544, %v541
        %v622 = vpack.c.bf16 %v552, %v549
        %v623 = vpack.c.bf16 %v560, %v557
        %v624 = vpack.c.bf16 %v568, %v565
        %v625 = vpack.c.bf16 %v576, %v573
        %v626 = vpack.c.bf16 %v584, %v581
        %v643 = vunpack.c.l.b16 %v603
        %v644 = vunpack.c.l.b16 %v604
        %v645 = vunpack.c.l.b16 %v605
        %v646 = vunpack.c.l.b16 %v606
        %v647 = vunpack.c.l.b16 %v607
        %v648 = vunpack.c.l.b16 %v608
        %v649 = vunpack.c.l.b16 %v609
        %v650 = vunpack.c.l.b16 %v610
        %v651 = vunpack.c.l.b16 %v611
        %v652 = vunpack.c.l.b16 %v612
        %v653 = vunpack.c.l.b16 %v613
        %v654 = vunpack.c.l.b16 %v614
        %v655 = vunpack.c.l.b16 %v615
        %v656 = vunpack.c.l.b16 %v616
        %v657 = vunpack.c.l.b16 %v617
        %v658 = vunpack.c.l.b16 %v618
        %v659 = vpack.c.b16 %v644, %v643
        %v660 = vpack.c.b16 %v646, %v645
        %v661 = vpack.c.b16 %v648, %v647
        %v662 = vpack.c.b16 %v650, %v649
        %v663 = vpack.c.b16 %v652, %v651
        %v664 = vpack.c.b16 %v654, %v653
        %v665 = vpack.c.b16 %v656, %v655
        %v666 = vpack.c.b16 %v658, %v657
        %675 = vmatprep.subr.bf16.mxu0 0
        %676 = vmatpush1.bf16.msra.mxu0 %v626
        %677 = vmatprep.subr.bf16.mxu0 0
        %678 = vmatpush1.bf16.msra.mxu0 %v625
        %679 = vmatprep.subr.bf16.mxu0 0
        %680 = vmatpush1.bf16.msra.mxu0 %v624
        %681 = vmatprep.subr.bf16.mxu0 0
        %682 = vmatpush1.bf16.msra.mxu0 %v623
        %683 = vmatprep.subr.bf16.mxu0 0
        %684 = vmatpush1.bf16.msra.mxu0 %v622
        %685 = vmatprep.subr.bf16.mxu0 0
        %686 = vmatpush1.bf16.msra.mxu0 %v621
        %687 = vmatprep.subr.bf16.mxu0 0
        %688 = vmatpush1.bf16.msra.mxu0 %v620
        %689 = vmatprep.subr.bf16.mxu0 0
        %690 = vmatpush1.bf16.msra.mxu0 %v619
        %691 = vmatprep.subr.bf16.mxu0 0
        %692 = vmatpush2.bf16.msra.mxu0 0
        %693 = vmatprep.subr.bf16.mxu0 0
        %694 = vmatpush2.bf16.msra.mxu0 0
        %695 = vmatprep.subr.bf16.mxu0 0
        %696 = vmatpush2.bf16.msra.mxu0 0
        %697 = vmatprep.subr.bf16.mxu0 0
        %698 = vmatpush2.bf16.msra.mxu0 0
        %699 = vmatprep.subr.bf16.mxu0 0
        %700 = vmatpush2.bf16.msra.mxu0 0
        %701 = vmatprep.subr.bf16.mxu0 0
        %702 = vmatpush2.bf16.msra.mxu0 0
        %703 = vmatprep.subr.bf16.mxu0 0
        %704 = vmatpush2.bf16.msra.mxu0 0
        %705 = vmatprep.subr.bf16.mxu0 0
        %706 = vmatpush2.bf16.msra.mxu0 0
        %707 = vmatprep.mubr.bf16.mxu0 0
        %708 = vmatmul.mubr.bf16.gmra.mxu0 %v659
        %v709 = vpop.f32.mrf.mxu0
        %v710 = vadd.f32 0.0, %v709
        %v711 = vpop.f32.mrf.mxu0
        %v712 = vpop.f32.mrf.mxu0
        %v713 = vadd.f32 0.0, %v712
        %v714 = vpop.f32.mrf.mxu0
        %715 = vmatprep.mubr.bf16.mxu0 0
        %716 = vmatmul.mubr.bf16.gmra.mxu0 %v660
        %v717 = vpop.f32.mrf.mxu0
        %v718 = vadd.f32 0.0, %v717
        %v719 = vpop.f32.mrf.mxu0
        %v720 = vpop.f32.mrf.mxu0
        %v721 = vadd.f32 0.0, %v720
        %v722 = vpop.f32.mrf.mxu0
        %723 = vmatprep.mubr.bf16.mxu0 0
        %724 = vmatmul.mubr.bf16.gmra.mxu0 %v661
        %v725 = vpop.f32.mrf.mxu0
        %v726 = vadd.f32 0.0, %v725
        %v727 = vpop.f32.mrf.mxu0
        %v728 = vpop.f32.mrf.mxu0
        %v729 = vadd.f32 0.0, %v728
        %v730 = vpop.f32.mrf.mxu0
        %731 = vmatprep.mubr.bf16.mxu0 0
        %732 = vmatmul.mubr.bf16.gmra.mxu0 %v662
        %v733 = vpop.f32.mrf.mxu0
        %v734 = vadd.f32 0.0, %v733
        %v735 = vpop.f32.mrf.mxu0
        %v736 = vpop.f32.mrf.mxu0
        %v737 = vadd.f32 0.0, %v736
        %v738 = vpop.f32.mrf.mxu0
        %739 = vmatprep.mubr.bf16.mxu0 0
        %740 = vmatmul.mubr.bf16.gmra.mxu0 %v663
        %v741 = vpop.f32.mrf.mxu0
        %v742 = vadd.f32 0.0, %v741
        %v743 = vpop.f32.mrf.mxu0
        %v744 = vpop.f32.mrf.mxu0
        %v745 = vadd.f32 0.0, %v744
        %v746 = vpop.f32.mrf.mxu0
        %747 = vmatprep.mubr.bf16.mxu0 0
        %748 = vmatmul.mubr.bf16.gmra.mxu0 %v664
        %v749 = vpop.f32.mrf.mxu0
        %v750 = vadd.f32 0.0, %v749
        %v751 = vpop.f32.mrf.mxu0
        %v752 = vpop.f32.mrf.mxu0
        %v753 = vadd.f32 0.0, %v752
        %v754 = vpop.f32.mrf.mxu0
        %755 = vmatprep.mubr.bf16.mxu0 0
        %756 = vmatmul.mubr.bf16.gmra.mxu0 %v665
        %v757 = vpop.f32.mrf.mxu0
        %v758 = vadd.f32 0.0, %v757
        %v759 = vpop.f32.mrf.mxu0
        %v760 = vpop.f32.mrf.mxu0
        %v761 = vadd.f32 0.0, %v760
        %v762 = vpop.f32.mrf.mxu0
        %763 = vmatprep.mubr.bf16.mxu0 0
        %764 = vmatmul.mubr.bf16.gmra.mxu0 %v666
        %v765 = vpop.f32.mrf.mxu0
        %v766 = vadd.f32 0.0, %v765
        %v767 = vpop.f32.mrf.mxu0
        %v768 = vpop.f32.mrf.mxu0
        %v769 = vadd.f32 0.0, %v768
        %v770 = vpop.f32.mrf.mxu0
        %771 = vdwg.mxu0
        %v772 = vadd.f32 %v587, %v710
        %v773 = vadd.f32 %v588, %v713
        %v774 = vadd.f32 %v589, %v718
        %v775 = vadd.f32 %v590, %v721
        %v776 = vadd.f32 %v591, %v726
        %v777 = vadd.f32 %v592, %v729
        %v778 = vadd.f32 %v593, %v734
        %v779 = vadd.f32 %v594, %v737
        %v780 = vadd.f32 %v595, %v742
        %v781 = vadd.f32 %v596, %v745
        %v782 = vadd.f32 %v597, %v750
        %v783 = vadd.f32 %v598, %v753
        %v784 = vadd.f32 %v599, %v758
        %v785 = vadd.f32 %v600, %v761
        %v786 = vadd.f32 %v601, %v766
        %v787 = vadd.f32 %v602, %v769
        %788 = vst [vmem:[#allocation2] sm:$0xff] %v772
        %789 = vst [vmem:[#allocation2 + $0x8] sm:$0xff] %v773
        %790 = vst [vmem:[#allocation2 + $0x10] sm:$0xff] %v774
        %791 = vst [vmem:[#allocation2 + $0x18] sm:$0xff] %v775
        %792 = vst [vmem:[#allocation2 + $0x20] sm:$0xff] %v776
        %793 = vst [vmem:[#allocation2 + $0x28] sm:$0xff] %v777
        %794 = vst [vmem:[#allocation2 + $0x30] sm:$0xff] %v778
        %795 = vst [vmem:[#allocation2 + $0x38] sm:$0xff] %v779
        %796 = vst [vmem:[#allocation2 + $0x40] sm:$0xff] %v780
        %797 = vst [vmem:[#allocation2 + $0x48] sm:$0xff] %v781
        %798 = vst [vmem:[#allocation2 + $0x50] sm:$0xff] %v782
        %799 = vst [vmem:[#allocation2 + $0x58] sm:$0xff] %v783
        %800 = vst [vmem:[#allocation2 + $0x60] sm:$0xff] %v784
        %801 = vst [vmem:[#allocation2 + $0x68] sm:$0xff] %v785
        %802 = vst [vmem:[#allocation2 + $0x70] sm:$0xff] %v786
        %803 = vst [vmem:[#allocation2 + $0x78] sm:$0xff] %v787
        %s804 = sld [smem:[#allocation7 + %s45]]
        %p805 = scmp.eq.s32.totalorder %s804, 1
        %p806 = pnand %p805, %p341
        %p807 = pneg %p806
        // Predicated region
        $region41: #{_lambda_.3} parent=31 // pred_check
          _
        $region42: #{_lambda_.3} parent=31 // pred_check_branch
          %809 = sbr.rel (%p806) target = $region44
        $region43: #{_lambda_.3} parent=31 // pred_region
          %v810 = vld [vmem:[#allocation2] sm:$0xff]
          %v811 = vld [vmem:[#allocation2 + $0x8] sm:$0xff]
          %v812 = vld [vmem:[#allocation2 + $0x10] sm:$0xff]
          %v813 = vld [vmem:[#allocation2 + $0x18] sm:$0xff]
          %v814 = vld [vmem:[#allocation2 + $0x20] sm:$0xff]
          %v815 = vld [vmem:[#allocation2 + $0x28] sm:$0xff]
          %v816 = vld [vmem:[#allocation2 + $0x30] sm:$0xff]
          %v817 = vld [vmem:[#allocation2 + $0x38] sm:$0xff]
          %v818 = vld [vmem:[#allocation2 + $0x40] sm:$0xff]
          %v819 = vld [vmem:[#allocation2 + $0x48] sm:$0xff]
          %v820 = vld [vmem:[#allocation2 + $0x50] sm:$0xff]
          %v821 = vld [vmem:[#allocation2 + $0x58] sm:$0xff]
          %v822 = vld [vmem:[#allocation2 + $0x60] sm:$0xff]
          %v823 = vld [vmem:[#allocation2 + $0x68] sm:$0xff]
          %v824 = vld [vmem:[#allocation2 + $0x70] sm:$0xff]
          %v825 = vld [vmem:[#allocation2 + $0x78] sm:$0xff]
          %vm826 = vcmp.ge.f32.partialorder %v810, 0.0
          %vm827 = vcmp.ge.f32.partialorder %v811, 0.0
          %vm828 = vcmp.ge.f32.partialorder %v812, 0.0
          %vm829 = vcmp.ge.f32.partialorder %v813, 0.0
          %vm830 = vcmp.ge.f32.partialorder %v814, 0.0
          %vm831 = vcmp.ge.f32.partialorder %v815, 0.0
          %vm832 = vcmp.ge.f32.partialorder %v816, 0.0
          %vm833 = vcmp.ge.f32.partialorder %v817, 0.0
          %vm834 = vcmp.ge.f32.partialorder %v818, 0.0
          %vm835 = vcmp.ge.f32.partialorder %v819, 0.0
          %vm836 = vcmp.ge.f32.partialorder %v820, 0.0
          %vm837 = vcmp.ge.f32.partialorder %v821, 0.0
          %vm838 = vcmp.ge.f32.partialorder %v822, 0.0
          %vm839 = vcmp.ge.f32.partialorder %v823, 0.0
          %vm840 = vcmp.ge.f32.partialorder %v824, 0.0
          %vm841 = vcmp.ge.f32.partialorder %v825, 0.0
          %v842 = vmul.f32 %v810, 0.01
          %v843 = vmul.f32 %v811, 0.01
          %v844 = vmul.f32 %v812, 0.01
          %v845 = vmul.f32 %v813, 0.01
          %v846 = vmul.f32 %v814, 0.01
          %v847 = vmul.f32 %v815, 0.01
          %v848 = vmul.f32 %v816, 0.01
          %v849 = vmul.f32 %v817, 0.01
          %v850 = vmul.f32 %v818, 0.01
          %v851 = vmul.f32 %v819, 0.01
          %v852 = vmul.f32 %v820, 0.01
          %v853 = vmul.f32 %v821, 0.01
          %v854 = vmul.f32 %v822, 0.01
          %v855 = vmul.f32 %v823, 0.01
          %v856 = vmul.f32 %v824, 0.01
          %v857 = vmul.f32 %v825, 0.01
          %v858 = vsel %vm826, %v810, %v842
          %v859 = vsel %vm827, %v811, %v843
          %v860 = vsel %vm828, %v812, %v844
          %v861 = vsel %vm829, %v813, %v845
          %v862 = vsel %vm830, %v814, %v846
          %v863 = vsel %vm831, %v815, %v847
          %v864 = vsel %vm832, %v816, %v848
          %v865 = vsel %vm833, %v817, %v849
          %v866 = vsel %vm834, %v818, %v850
          %v867 = vsel %vm835, %v819, %v851
          %v868 = vsel %vm836, %v820, %v852
          %v869 = vsel %vm837, %v821, %v853
          %v870 = vsel %vm838, %v822, %v854
          %v871 = vsel %vm839, %v823, %v855
          %v872 = vsel %vm840, %v824, %v856
          %v873 = vsel %vm841, %v825, %v857
          %v874 = vlaneseq
          %v875 = vand.u32 %v874, 127
          %vm876 = vcmp.eq.s32.totalorder %v875, 32
          %v877 = vsel %vm876, 1.0, %v858
          %v878 = vsel %vm876, 1.0, %v859
          %v879 = vsel %vm876, 1.0, %v860
          %v880 = vsel %vm876, 1.0, %v861
          %v881 = vsel %vm876, 1.0, %v862
          %v882 = vsel %vm876, 1.0, %v863
          %v883 = vsel %vm876, 1.0, %v864
          %v884 = vsel %vm876, 1.0, %v865
          %v885 = vsel %vm876, 1.0, %v866
          %v886 = vsel %vm876, 1.0, %v867
          %v887 = vsel %vm876, 1.0, %v868
          %v888 = vsel %vm876, 1.0, %v869
          %v889 = vsel %vm876, 1.0, %v870
          %v890 = vsel %vm876, 1.0, %v871
          %v891 = vsel %vm876, 1.0, %v872
          %v892 = vsel %vm876, 1.0, %v873
          %v893 = vpack.c.bf16 %v878, %v877
          %v894 = vpack.c.bf16 %v880, %v879
          %v895 = vpack.c.bf16 %v882, %v881
          %v896 = vpack.c.bf16 %v884, %v883
          %v897 = vpack.c.bf16 %v886, %v885
          %v898 = vpack.c.bf16 %v888, %v887
          %v899 = vpack.c.bf16 %v890, %v889
          %v900 = vpack.c.bf16 %v892, %v891
          %v909 = vunpack.c.l.b16 %v893
          %v910 = vunpack.c.h.b16 %v893
          %v911 = vunpack.c.l.b16 %v894
          %v912 = vunpack.c.h.b16 %v894
          %v913 = vunpack.c.l.b16 %v895
          %v914 = vunpack.c.h.b16 %v895
          %v915 = vunpack.c.l.b16 %v896
          %v916 = vunpack.c.h.b16 %v896
          %v917 = vunpack.c.l.b16 %v897
          %v918 = vunpack.c.h.b16 %v897
          %v919 = vunpack.c.l.b16 %v898
          %v920 = vunpack.c.h.b16 %v898
          %v921 = vunpack.c.l.b16 %v899
          %v922 = vunpack.c.h.b16 %v899
          %v923 = vunpack.c.l.b16 %v900
          %v924 = vunpack.c.h.b16 %v900
          %v925 = vpack.c.b16 %v909, %v909
          %v926 = vpack.c.b16 %v910, %v910
          %v927 = vpack.c.b16 %v911, %v911
          %v928 = vpack.c.b16 %v912, %v912
          %v929 = vpack.c.b16 %v913, %v913
          %v930 = vpack.c.b16 %v914, %v914
          %v931 = vpack.c.b16 %v915, %v915
          %v932 = vpack.c.b16 %v916, %v916
          %v933 = vpack.c.b16 %v917, %v917
          %v934 = vpack.c.b16 %v918, %v918
          %v935 = vpack.c.b16 %v919, %v919
          %v936 = vpack.c.b16 %v920, %v920
          %v937 = vpack.c.b16 %v921, %v921
          %v938 = vpack.c.b16 %v922, %v922
          %v939 = vpack.c.b16 %v923, %v923
          %v940 = vpack.c.b16 %v924, %v924
          %957 = vst [vmem:[%s335] sm:$0xf] %v925
          %958 = vst [vmem:[%s335 + $0x4] sm:$0xf] %v926
          %959 = vst [vmem:[%s335 + $0x8] sm:$0xf] %v927
          %960 = vst [vmem:[%s335 + $0xc] sm:$0xf] %v928
          %961 = vst [vmem:[%s335 + $0x10] sm:$0xf] %v929
          %962 = vst [vmem:[%s335 + $0x14] sm:$0xf] %v930
          %963 = vst [vmem:[%s335 + $0x18] sm:$0xf] %v931
          %964 = vst [vmem:[%s335 + $0x1c] sm:$0xf] %v932
          %965 = vst [vmem:[%s335 + $0x20] sm:$0xf] %v933
          %966 = vst [vmem:[%s335 + $0x24] sm:$0xf] %v934
          %967 = vst [vmem:[%s335 + $0x28] sm:$0xf] %v935
          %968 = vst [vmem:[%s335 + $0x2c] sm:$0xf] %v936
          %969 = vst [vmem:[%s335 + $0x30] sm:$0xf] %v937
          %970 = vst [vmem:[%s335 + $0x34] sm:$0xf] %v938
          %971 = vst [vmem:[%s335 + $0x38] sm:$0xf] %v939
          %972 = vst [vmem:[%s335 + $0x3c] sm:$0xf] %v940
        $region44: #{_lambda_.3} parent=31 // pred_fallthru
          _
        %s973 = sld [smem:[#allocation5 + %s45]]
        %s974 = smul.u32 16, %s44
        %p975 = scmp.lt.s32.totalorder %s973, 2
        %s976 = scalar_select %p975, %s973, 2
        %p977 = scmp.lt.s32.totalorder %s974, 15
        %s978 = scalar_select %p977, %s974, 15
        %s979 = smul.addr %s976, 16
        %s980 = sadd.s32 %s978, %s979
        %s981 = smul.addr %s980, 4
        %s982 = scalar_lea.vmem %s7, %s981
        // Predicated region
        $region45: #{_lambda_.3} parent=31 // pred_check
          %p983 = pneg %p166
        $region46: #{_lambda_.3} parent=31 // pred_check_branch
          %985 = sbr.rel (%p983) target = $region48
        $region47: #{_lambda_.3} parent=31 // pred_region
          %s986 = sld [smem:[#allocation5 + %s45]]
          %s987 = smul.u32 16, %s44
        $region48: #{_lambda_.3} parent=31 // pred_fallthru
          _
      $region32: #{_lambda_.3} parent=5 // pred_fallthru
        _
      %p988 = scmp.le.s32.totalorder 2, %s34
      // Predicated region
      $region49: #{_lambda_.3} parent=5 // pred_check
        %p989 = pneg %p988
      $region50: #{_lambda_.3} parent=5 // pred_check_branch
        %991 = sbr.rel (%p989) target = $region52
      $region51: #{_lambda_.3} parent=5 // pred_region
        %s992 = ssub.s32 %s34, 2
        // Predicated region
        $region53: #{_lambda_.3} parent=51 // pred_check
          %p993 = pneg %p172
        $region54: #{_lambda_.3} parent=51 // pred_check_branch
          %995 = sbr.rel (%p993) target = $region56
        $region55: #{_lambda_.3} parent=51 // pred_region
          %s996 = sld [smem:[#allocation5 + %s48]]
          %s997 = smul.u32 16, %s47
          %p998 = scmp.lt.s32.totalorder %s996, 2
          %s999 = scalar_select %p998, %s996, 2
          %p1000 = scmp.lt.s32.totalorder %s997, 15
          %s1001 = scalar_select %p1000, %s997, 15
          %s1002 = smul.addr %s999, 16
          %s1003 = sadd.s32 %s1001, %s1002
          %s1004 = smul.addr %s1003, 4
          %s1005 = scalar_lea.vmem %s7, %s1004
        $region56: #{_lambda_.3} parent=51 // pred_fallthru
          _
      $region52: #{_lambda_.3} parent=5 // pred_fallthru
        _
    $region6: #{_lambda_.3} parent=1 // loop_footer
      %s38 = sadd.s32 1, %s34
    $region7: #{_lambda_.3} parent=1 // loop_footer_branch
      %33 = sbr.rel target = $region3
    $region8: #{_lambda_.3} parent=1 // loop_exit
      _
    %1006 = vsyncpa [#allocation9], 1
    %s1007 = scalar_lea.sflag [#allocation9], 1
    %1008 = vsyncpa %s1007, 1

// kernel: _lambda_.4
$region0: #{_lambda_.4}
  #allocation0 [shape = 'u32[]', space=smem, size = 0x4, offset = 0x4, fixed_abs, tag = 'smem constant byte address 0x4 - core index']
  #allocation1 [shape = 'u32[144,128]{1,0:T(1,128)}', space=vmem, size = 0x12000, scoped, tag = 'internal scratch']
  #allocation2 [shape = 'f32[128,128]{1,0:T(8,128)}', space=vmem, size = 0x10000, scoped, tag = 'scratch operand']
  #allocation3 [shape = 's32[1]{0}', space=sflag, size = 0x4, scoped, tag = 'scoped memory for _lambda_.4']
  #allocation4 [shape = 'u8[512]{0}', space=smem, size = 0x200, scoped, tag = 'prefetched SMEM operand 0']
  #allocation5 [shape = 'u8[512]{0}', space=smem, size = 0x200, scoped, tag = 'prefetched SMEM operand 1']
  #allocation6 [shape = 'u8[512]{0}', space=smem, size = 0x200, scoped, tag = 'prefetched SMEM operand 2']
  #allocation7 [shape = 'u8[512]{0}', space=smem, size = 0x200, scoped, tag = 'prefetched SMEM operand 3']
  %s0 = inlined_call_operand.vmem [shape: s32[5], index: 0, kind: input, shape index: {}]
  %s1 = inlined_call_operand.vmem [shape: s32[5], index: 1, kind: input, shape index: {}]
  %s2 = inlined_call_operand.vmem [shape: s32[5], index: 2, kind: input, shape index: {}]
  %s3 = inlined_call_operand.vmem [shape: s32[5], index: 3, kind: input, shape index: {}]
  %s4 = inlined_call_operand.vmem [shape: bf16[3,128,128], index: 4, kind: input, shape index: {}]
  %s5 = inlined_call_operand.vmem [shape: bf16[5,128,128], index: 5, kind: input, shape index: {}]
  %s6 = inlined_call_operand.vmem [shape: bf16[5,128,128], index: 6, kind: input, shape index: {}]
  %s7 = inlined_call_operand.vmem [shape: bf16[3,128,128], index: 7, kind: output, shape index: {}]
  %s8 = sld [smem:[#allocation0]]
  $region53: #{_lambda_.4} parent=0
    _
  %s10 = ssub.s32 1, %s8
  %s11 = scalar_select 0, %s10, %s8
  %s12 = sshll.u32 %s0, 4
  %s13 = int_to_ptr.vmem [resolvable:$true] %s12
  %15 = dma.vmem_to_smem %s13, 16, [#allocation4], [#allocation3]
  %s16 = sshll.u32 %s1, 4
  %s17 = int_to_ptr.vmem [resolvable:$true] %s16
  %19 = dma.vmem_to_smem %s17, 16, [#allocation5], [#allocation3]
  %s20 = sshll.u32 %s2, 4
  %s21 = int_to_ptr.vmem [resolvable:$true] %s20
  %23 = dma.vmem_to_smem %s21, 16, [#allocation6], [#allocation3]
  %s24 = sshll.u32 %s3, 4
  %s25 = int_to_ptr.vmem [resolvable:$true] %s24
  %27 = dma.vmem_to_smem %s25, 16, [#allocation7], [#allocation3]
  %28 = dma.done [#allocation3], 64
  %29 = sfence
  loop: start=0, step=1, limit=7
  $region2: #{_lambda_.4} parent=0 // loop_pre_header
    _
  $region3: #{_lambda_.4} parent=0 // loop_header
    %s31 = sphi 0, %s35
    %p32 = scmp.ge.s32.totalorder %s31, 7
    %s38 = sphi 0, %s57
    %s39 = sphi 0, %s53
    %s40 = sphi 0, %s49
    %s41 = sphi 0, %s38
    %s42 = sphi 0, %s39
    %s43 = sphi 0, %s40
    %s44 = sphi 0, %s41
    %s45 = sphi 0, %s42
    %s46 = sphi 0, %s43
    %s64 = sphi 0, %s66
    %s67 = sphi 0, %s64
    %s68 = sphi 0, %s67
    %s84 = sphi 0, %s68
    %s94 = sphi 0, %s96
    %s97 = sphi 0, %s94
    %s98 = sphi 0, %s97
    %s114 = sphi 0, %s98
    %s120 = sphi 0, %s122
    %s123 = sphi 0, %s120
    %s124 = sphi 0, %s123
    %s140 = sphi 0, %s124
    %s150 = sphi 0, %s152
    %s153 = sphi 0, %s150
    %s154 = sphi 0, %s153
    %s170 = sphi 0, %s154
  $region4: #{_lambda_.4} parent=0 // loop_header_branch
    %34 = sbr.rel (%p32) target = $region8
  $region5: #{_lambda_.4} parent=0 // loop_body
    %s36 = ssub.s32 %s31, 1
    %s37 = ssub.s32 %s31, 2
    %s47 = sadd.s32 1, %s40
    %p48 = scmp.ge.s32.totalorder %s47, 1
    %s49 = scalar_select %p48, 0, %s47
    %s50 = sadd.s32 1, %s39
    %s51 = scalar_select %p48, %s50, %s39
    %p52 = scmp.ge.s32.totalorder %s51, 5
    %s53 = scalar_select %p52, 0, %s51
    %s54 = sadd.s32 1, %s38
    %s55 = scalar_select %p52, %s54, %s38
    %p56 = scmp.ge.s32.totalorder %s55, 1
    %s57 = scalar_select %p56, 0, %s55
    %s58 = sld [smem:[#allocation4 + %s39]]
    %s59 = sld [smem:[#allocation4 + %s53]]
    %s60 = ssub.s32 %s58, %s59
    %s61 = ssub.s32 %s40, %s49
    %s62 = sor.u32 %s60, %s61
    %p63 = scmp.eq.s32.totalorder %s62, 0
    %s65 = sadd.s32 %s64, 1
    %s66 = scalar_select %p63, %s64, %s65
    %p69 = pneg %p63
    %p70 = scmp.eq.s32.totalorder %s31, 4
    %p71 = por %p69, %p70
    %p72 = scmp.ne.s32.totalorder %s64, %s67
    %p73 = scmp.eq.s32.totalorder %s31, 0
    %p74 = por %p72, %p73
    %p75 = scmp.ne.s32.totalorder %s64, %s67
    %p76 = scmp.eq.s32.totalorder %s36, 4
    %p77 = por %p75, %p76
    %p78 = scmp.ne.s32.totalorder %s67, %s68
    %p79 = scmp.eq.s32.totalorder %s36, 0
    %p80 = por %p78, %p79
    %p81 = scmp.ne.s32.totalorder %s67, %s68
    %p82 = scmp.eq.s32.totalorder %s37, 4
    %p83 = por %p81, %p82
    %p85 = scmp.ne.s32.totalorder %s68, %s84
    %p86 = scmp.eq.s32.totalorder %s37, 0
    %p87 = por %p85, %p86
    %s88 = ssub.s32 %s39, %s53
    %s89 = ssub.s32 %s38, %s57
    %s90 = sor.u32 %s88, %s89
    %s91 = ssub.s32 %s40, %s49
    %s92 = sor.u32 %s90, %s91
    %p93 = scmp.eq.s32.totalorder %s92, 0
    %s95 = sadd.s32 %s94, 1
    %s96 = scalar_select %p93, %s94, %s95
    %p99 = pneg %p93
    %p100 = scmp.eq.s32.totalorder %s31, 4
    %p101 = por %p99, %p100
    %p102 = scmp.ne.s32.totalorder %s94, %s97
    %p103 = scmp.eq.s32.totalorder %s31, 0
    %p104 = por %p102, %p103
    %p105 = scmp.ne.s32.totalorder %s94, %s97
    %p106 = scmp.eq.s32.totalorder %s36, 4
    %p107 = por %p105, %p106
    %p108 = scmp.ne.s32.totalorder %s97, %s98
    %p109 = scmp.eq.s32.totalorder %s36, 0
    %p110 = por %p108, %p109
    %p111 = scmp.ne.s32.totalorder %s97, %s98
    %p112 = scmp.eq.s32.totalorder %s37, 4
    %p113 = por %p111, %p112
    %p115 = scmp.ne.s32.totalorder %s98, %s114
    %p116 = scmp.eq.s32.totalorder %s37, 0
    %p117 = por %p115, %p116
    %s118 = ssub.s32 %s39, %s53
    %p119 = scmp.eq.s32.totalorder %s118, 0
    %s121 = sadd.s32 %s120, 1
    %s122 = scalar_select %p119, %s120, %s121
    %p125 = pneg %p119
    %p126 = scmp.eq.s32.totalorder %s31, 4
    %p127 = por %p125, %p126
    %p128 = scmp.ne.s32.totalorder %s120, %s123
    %p129 = scmp.eq.s32.totalorder %s31, 0
    %p130 = por %p128, %p129
    %p131 = scmp.ne.s32.totalorder %s120, %s123
    %p132 = scmp.eq.s32.totalorder %s36, 4
    %p133 = por %p131, %p132
    %p134 = scmp.ne.s32.totalorder %s123, %s124
    %p135 = scmp.eq.s32.totalorder %s36, 0
    %p136 = por %p134, %p135
    %p137 = scmp.ne.s32.totalorder %s123, %s124
    %p138 = scmp.eq.s32.totalorder %s37, 4
    %p139 = por %p137, %p138
    %p141 = scmp.ne.s32.totalorder %s124, %s140
    %p142 = scmp.eq.s32.totalorder %s37, 0
    %p143 = por %p141, %p142
    %s144 = sld [smem:[#allocation5 + %s39]]
    %s145 = sld [smem:[#allocation5 + %s53]]
    %s146 = ssub.s32 %s144, %s145
    %s147 = ssub.s32 %s38, %s57
    %s148 = sor.u32 %s146, %s147
    %p149 = scmp.eq.s32.totalorder %s148, 0
    %s151 = sadd.s32 %s150, 1
    %s152 = scalar_select %p149, %s150, %s151
    %p155 = pneg %p149
    %p156 = scmp.eq.s32.totalorder %s31, 4
    %p157 = por %p155, %p156
    %p158 = scmp.ne.s32.totalorder %s150, %s153
    %p159 = scmp.eq.s32.totalorder %s31, 0
    %p160 = por %p158, %p159
    %p161 = scmp.ne.s32.totalorder %s150, %s153
    %p162 = scmp.eq.s32.totalorder %s36, 4
    %p163 = por %p161, %p162
    %p164 = scmp.ne.s32.totalorder %s153, %s154
    %p165 = scmp.eq.s32.totalorder %s36, 0
    %p166 = por %p164, %p165
    %p167 = scmp.ne.s32.totalorder %s153, %s154
    %p168 = scmp.eq.s32.totalorder %s37, 4
    %p169 = por %p167, %p168
    %p171 = scmp.ne.s32.totalorder %s154, %s170
    %p172 = scmp.eq.s32.totalorder %s37, 0
    %p173 = por %p171, %p172
    %p174 = scmp.le.s32.totalorder 1, %s31
    %p175 = scmp.lt.s32.totalorder %s31, 6
    %p176 = pnand %p174, %p175
    %p177 = pneg %p176
    // Predicated region
    $region9: #{_lambda_.4} parent=5 // pred_check
      _
    $region10: #{_lambda_.4} parent=5 // pred_check_branch
      %179 = sbr.rel (%p176) target = $region12
    $region11: #{_lambda_.4} parent=5 // pred_region
      %s180 = ssub.s32 %s31, 1
    $region12: #{_lambda_.4} parent=5 // pred_fallthru
      _
    %p181 = scmp.lt.s32.totalorder %s31, 5
    // Predicated region
    $region13: #{_lambda_.4} parent=5 // pred_check
      %p182 = pneg %p181
    $region14: #{_lambda_.4} parent=5 // pred_check_branch
      %184 = sbr.rel (%p182) target = $region16
    $region15: #{_lambda_.4} parent=5 // pred_region
      // Predicated region
      $region17: #{_lambda_.4} parent=15 // pred_check
        %p185 = pneg %p74
      $region18: #{_lambda_.4} parent=15 // pred_check_branch
        %187 = sbr.rel (%p185) target = $region20
      $region19: #{_lambda_.4} parent=15 // pred_region
        %s188 = sld [smem:[#allocation4 + %s39]]
        %s189 = smul.u32 16, %s40
        %p190 = scmp.lt.s32.totalorder %s188, 2
        %s191 = scalar_select %p190, %s188, 2
        %p192 = scmp.lt.s32.totalorder %s189, 15
        %s193 = scalar_select %p192, %s189, 15
        %s194 = smul.addr %s191, 16
        %s195 = sadd.s32 %s193, %s194
        %s196 = smul.addr %s195, 4
        %s197 = scalar_lea.vmem %s4, %s196
        %s198 = sld [smem:[#allocation4 + %s39]]
        %s199 = smul.u32 16, %s40
      $region20: #{_lambda_.4} parent=15 // pred_fallthru
        _
      // Predicated region
      $region21: #{_lambda_.4} parent=15 // pred_check
        %p200 = pneg %p104
      $region22: #{_lambda_.4} parent=15 // pred_check_branch
        %202 = sbr.rel (%p200) target = $region24
      $region23: #{_lambda_.4} parent=15 // pred_region
        %s203 = smul.u32 16, %s38
        %p204 = scmp.lt.s32.totalorder %s39, 4
        %s205 = scalar_select %p204, %s39, 4
        %p206 = scmp.lt.s32.totalorder %s203, 15
        %s207 = scalar_select %p206, %s203, 15
        %p208 = scmp.lt.s32.totalorder %s40, 0
        %s209 = scalar_select %p208, %s40, 0
        %s210 = sadd.s32 %s209, %s207
        %s211 = smul.addr %s205, 16
        %s212 = sadd.s32 %s210, %s211
        %s213 = smul.addr %s212, 4
        %s214 = scalar_lea.vmem %s5, %s213
        %s215 = smul.u32 16, %s38
      $region24: #{_lambda_.4} parent=15 // pred_fallthru
        _
      // Predicated region
      $region25: #{_lambda_.4} parent=15 // pred_check
        %p216 = pneg %p130
      $region26: #{_lambda_.4} parent=15 // pred_check_branch
        %218 = sbr.rel (%p216) target = $region28
      $region27: #{_lambda_.4} parent=15 // pred_region
        %p219 = scmp.lt.s32.totalorder %s39, 4
        %s220 = scalar_select %p219, %s39, 4
        %s221 = smul.addr %s220, 16
        %s222 = smul.addr %s221, 4
        %s223 = scalar_lea.vmem %s6, %s222
      $region28: #{_lambda_.4} parent=15 // pred_fallthru
        _
    $region16: #{_lambda_.4} parent=5 // pred_fallthru
      _
    %p224 = scmp.le.s32.totalorder 1, %s31
    %p225 = scmp.lt.s32.totalorder %s31, 6
    %p226 = pnand %p224, %p225
    %p227 = pneg %p226
    // Predicated region
    $region29: #{_lambda_.4} parent=5 // pred_check
      _
    $region30: #{_lambda_.4} parent=5 // pred_check_branch
      %229 = sbr.rel (%p226) target = $region32
    $region31: #{_lambda_.4} parent=5 // pred_region
      %s230 = ssub.s32 %s31, 1
      %s231 = sld [smem:[#allocation4 + %s42]]
      %s232 = smul.u32 16, %s43
      %p233 = scmp.lt.s32.totalorder %s231, 2
      %s234 = scalar_select %p233, %s231, 2
      %p235 = scmp.lt.s32.totalorder %s232, 15
      %s236 = scalar_select %p235, %s232, 15
      %s237 = smul.addr %s234, 16
      %s238 = sadd.s32 %s236, %s237
      %s239 = smul.addr %s238, 4
      %s240 = scalar_lea.vmem %s4, %s239
      %p241 = pneg %p80
      %p242 = pneg %p77
      %s243 = smul.u32 16, %s41
      %p244 = scmp.lt.s32.totalorder %s42, 4
      %s245 = scalar_select %p244, %s42, 4
      %p246 = scmp.lt.s32.totalorder %s243, 15
      %s247 = scalar_select %p246, %s243, 15
      %p248 = scmp.lt.s32.totalorder %s43, 0
      %s249 = scalar_select %p248, %s43, 0
      %s250 = sadd.s32 %s249, %s247
      %s251 = smul.addr %s245, 16
      %s252 = sadd.s32 %s250, %s251
      %s253 = smul.addr %s252, 4
      %s254 = scalar_lea.vmem %s5, %s253
      %p255 = pneg %p110
      %p256 = pneg %p107
      %p257 = scmp.lt.s32.totalorder %s42, 4
      %s258 = scalar_select %p257, %s42, 4
      %s259 = smul.addr %s258, 16
      %s260 = smul.addr %s259, 4
      %s261 = scalar_lea.vmem %s6, %s260
      %p262 = pneg %p136
      %p263 = pneg %p133
      %p264 = pneg %p166
      %p265 = pneg %p163
      %s266 = sld [smem:[#allocation5 + %s42]]
      %s267 = smul.u32 16, %s41
      %p268 = scmp.lt.s32.totalorder %s266, 2
      %s269 = scalar_select %p268, %s266, 2
      %p270 = scmp.lt.s32.totalorder %s267, 15
      %s271 = scalar_select %p270, %s267, 15
      %s272 = smul.addr %s269, 16
      %s273 = sadd.s32 %s271, %s272
      %s274 = smul.addr %s273, 4
      %s275 = scalar_lea.vmem %s7, %s274
      %s276 = sld [smem:[#allocation4 + %s42]]
      %s277 = smul.u32 16, %s43
      %p278 = scmp.lt.s32.totalorder %s276, 2
      %s279 = scalar_select %p278, %s276, 2
      %p280 = scmp.lt.s32.totalorder %s277, 15
      %s281 = scalar_select %p280, %s277, 15
      %s282 = smul.addr %s279, 16
      %s283 = sadd.s32 %s281, %s282
      %s284 = smul.addr %s283, 4
      %s285 = scalar_lea.vmem %s4, %s284
      %s286 = sld [smem:[#allocation4 + %s42]]
      %s287 = smul.u32 16, %s43
      %s288 = smul.u32 16, %s41
      %p289 = scmp.lt.s32.totalorder %s42, 4
      %s290 = scalar_select %p289, %s42, 4
      %p291 = scmp.lt.s32.totalorder %s288, 15
      %s292 = scalar_select %p291, %s288, 15
      %p293 = scmp.lt.s32.totalorder %s43, 0
      %s294 = scalar_select %p293, %s43, 0
      %s295 = sadd.s32 %s294, %s292
      %s296 = smul.addr %s290, 16
      %s297 = sadd.s32 %s295, %s296
      %s298 = smul.addr %s297, 4
      %s299 = scalar_lea.vmem %s5, %s298
      %s300 = smul.u32 16, %s41
      %p301 = scmp.lt.s32.totalorder %s42, 4
      %s302 = scalar_select %p301, %s42, 4
      %s303 = smul.addr %s302, 16
      %s304 = smul.addr %s303, 4
      %s305 = scalar_lea.vmem %s6, %s304
      %s306 = sld [smem:[#allocation5 + %s42]]
      %s307 = smul.u32 16, %s41
      %p308 = scmp.lt.s32.totalorder %s306, 2
      %s309 = scalar_select %p308, %s306, 2
      %p310 = scmp.lt.s32.totalorder %s307, 15
      %s311 = scalar_select %p310, %s307, 15
      %s312 = smul.addr %s309, 16
      %s313 = sadd.s32 %s311, %s312
      %s314 = smul.addr %s313, 4
      %s315 = scalar_lea.vmem %s7, %s314
      %s316 = sld [smem:[#allocation5 + %s42]]
      %s317 = smul.u32 16, %s41
      %s319 = sld [smem:[#allocation6 + %s42]]
      %p320 = scmp.eq.s32.totalorder %s319, 1
      %p321 = scmp.eq.s32.totalorder %s43, 0
      %p322 = pnand %p320, %p321
      %p323 = pneg %p322
      // Predicated region
      $region33: #{_lambda_.4} parent=31 // pred_check
        _
      $region34: #{_lambda_.4} parent=31 // pred_check_branch
        %325 = sbr.rel (%p322) target = $region36
      $region35: #{_lambda_.4} parent=31 // pred_region
        %326 = vst [vmem:[#allocation2] sm:$0xff] 0.0
        %327 = vst [vmem:[#allocation2 + $0x8] sm:$0xff] 0.0
        %328 = vst [vmem:[#allocation2 + $0x10] sm:$0xff] 0.0
        %329 = vst [vmem:[#allocation2 + $0x18] sm:$0xff] 0.0
        %330 = vst [vmem:[#allocation2 + $0x20] sm:$0xff] 0.0
        %331 = vst [vmem:[#allocation2 + $0x28] sm:$0xff] 0.0
        %332 = vst [vmem:[#allocation2 + $0x30] sm:$0xff] 0.0
        %333 = vst [vmem:[#allocation2 + $0x38] sm:$0xff] 0.0
        %334 = vst [vmem:[#allocation2 + $0x40] sm:$0xff] 0.0
        %335 = vst [vmem:[#allocation2 + $0x48] sm:$0xff] 0.0
        %336 = vst [vmem:[#allocation2 + $0x50] sm:$0xff] 0.0
        %337 = vst [vmem:[#allocation2 + $0x58] sm:$0xff] 0.0
        %338 = vst [vmem:[#allocation2 + $0x60] sm:$0xff] 0.0
        %339 = vst [vmem:[#allocation2 + $0x68] sm:$0xff] 0.0
        %340 = vst [vmem:[#allocation2 + $0x70] sm:$0xff] 0.0
        %341 = vst [vmem:[#allocation2 + $0x78] sm:$0xff] 0.0
      $region36: #{_lambda_.4} parent=31 // pred_fallthru
        _
      %v342 = vld [vmem:[%s285] sm:$0xf]
      %v343 = vld [vmem:[%s285 + $0x4] sm:$0xf]
      %v344 = vld [vmem:[%s285 + $0x8] sm:$0xf]
      %v345 = vld [vmem:[%s285 + $0xc] sm:$0xf]
      %v346 = vld [vmem:[%s285 + $0x10] sm:$0xf]
      %v347 = vld [vmem:[%s285 + $0x14] sm:$0xf]
      %v348 = vld [vmem:[%s285 + $0x18] sm:$0xf]
      %v349 = vld [vmem:[%s285 + $0x1c] sm:$0xf]
      %v350 = vld [vmem:[%s285 + $0x20] sm:$0xf]
      %v351 = vld [vmem:[%s285 + $0x24] sm:$0xf]
      %v352 = vld [vmem:[%s285 + $0x28] sm:$0xf]
      %v353 = vld [vmem:[%s285 + $0x2c] sm:$0xf]
      %v354 = vld [vmem:[%s285 + $0x30] sm:$0xf]
      %v355 = vld [vmem:[%s285 + $0x34] sm:$0xf]
      %v356 = vld [vmem:[%s285 + $0x38] sm:$0xf]
      %v357 = vld [vmem:[%s285 + $0x3c] sm:$0xf]
      %v358 = vld [vmem:[%s305] sm:$0xf]
      %v359 = vld [vmem:[%s305 + $0x4] sm:$0xf]
      %v360 = vld [vmem:[%s305 + $0x8] sm:$0xf]
      %v361 = vld [vmem:[%s305 + $0xc] sm:$0xf]
      %v362 = vld [vmem:[%s305 + $0x10] sm:$0xf]
      %v363 = vld [vmem:[%s305 + $0x14] sm:$0xf]
      %v364 = vld [vmem:[%s305 + $0x18] sm:$0xf]
      %v365 = vld [vmem:[%s305 + $0x1c] sm:$0xf]
      %v366 = vld [vmem:[%s305 + $0x20] sm:$0xf]
      %v367 = vld [vmem:[%s305 + $0x24] sm:$0xf]
      %v368 = vld [vmem:[%s305 + $0x28] sm:$0xf]
      %v369 = vld [vmem:[%s305 + $0x2c] sm:$0xf]
      %v370 = vld [vmem:[%s305 + $0x30] sm:$0xf]
      %v371 = vld [vmem:[%s305 + $0x34] sm:$0xf]
      %v372 = vld [vmem:[%s305 + $0x38] sm:$0xf]
      %v373 = vld [vmem:[%s305 + $0x3c] sm:$0xf]
      %v390 = vunpack.c.l.b16 %v342
      %v391 = vunpack.c.l.b16 %v343
      %v392 = vunpack.c.l.b16 %v344
      %v393 = vunpack.c.l.b16 %v345
      %v394 = vunpack.c.l.b16 %v346
      %v395 = vunpack.c.l.b16 %v347
      %v396 = vunpack.c.l.b16 %v348
      %v397 = vunpack.c.l.b16 %v349
      %v398 = vunpack.c.l.b16 %v350
      %v399 = vunpack.c.l.b16 %v351
      %v400 = vunpack.c.l.b16 %v352
      %v401 = vunpack.c.l.b16 %v353
      %v402 = vunpack.c.l.b16 %v354
      %v403 = vunpack.c.l.b16 %v355
      %v404 = vunpack.c.l.b16 %v356
      %v405 = vunpack.c.l.b16 %v357
      %v406 = vpack.c.b16 %v391, %v390
      %v407 = vpack.c.b16 %v393, %v392
      %v408 = vpack.c.b16 %v395, %v394
      %v409 = vpack.c.b16 %v397, %v396
      %v410 = vpack.c.b16 %v399, %v398
      %v411 = vpack.c.b16 %v401, %v400
      %v412 = vpack.c.b16 %v403, %v402
      %v413 = vpack.c.b16 %v405, %v404
      %v438 = vunpack.c.l.b16 %v358
      %v439 = vunpack.c.l.b16 %v359
      %v440 = vunpack.c.l.b16 %v360
      %v441 = vunpack.c.l.b16 %v361
      %v442 = vunpack.c.l.b16 %v362
      %v443 = vunpack.c.l.b16 %v363
      %v444 = vunpack.c.l.b16 %v364
      %v445 = vunpack.c.l.b16 %v365
      %v446 = vunpack.c.l.b16 %v366
      %v447 = vunpack.c.l.b16 %v367
      %v448 = vunpack.c.l.b16 %v368
      %v449 = vunpack.c.l.b16 %v369
      %v450 = vunpack.c.l.b16 %v370
      %v451 = vunpack.c.l.b16 %v371
      %v452 = vunpack.c.l.b16 %v372
      %v453 = vunpack.c.l.b16 %v373
      %v454 = vpack.c.b16 %v439, %v438
      %v455 = vpack.c.b16 %v441, %v440
      %v456 = vpack.c.b16 %v443, %v442
      %v457 = vpack.c.b16 %v445, %v444
      %v458 = vpack.c.b16 %v447, %v446
      %v459 = vpack.c.b16 %v449, %v448
      %v460 = vpack.c.b16 %v451, %v450
      %v461 = vpack.c.b16 %v453, %v452
      %470 = vmatprep.subr.bf16.mxu0 0
      %471 = vmatpush1.bf16.msra.mxu0 %v461
      %472 = vmatprep.subr.bf16.mxu0 0
      %473 = vmatpush1.bf16.msra.mxu0 %v460
      %474 = vmatprep.subr.bf16.mxu0 0
      %475 = vmatpush1.bf16.msra.mxu0 %v459
      %476 = vmatprep.subr.bf16.mxu0 0
      %477 = vmatpush1.bf16.msra.mxu0 %v458
      %478 = vmatprep.subr.bf16.mxu0 0
      %479 = vmatpush1.bf16.msra.mxu0 %v457
      %480 = vmatprep.subr.bf16.mxu0 0
      %481 = vmatpush1.bf16.msra.mxu0 %v456
      %482 = vmatprep.subr.bf16.mxu0 0
      %483 = vmatpush1.bf16.msra.mxu0 %v455
      %484 = vmatprep.subr.bf16.mxu0 0
      %485 = vmatpush1.bf16.msra.mxu0 %v454
      %486 = vmatprep.subr.bf16.mxu0 0
      %487 = vmatpush2.bf16.msra.mxu0 0
      %488 = vmatprep.subr.bf16.mxu0 0
      %489 = vmatpush2.bf16.msra.mxu0 0
      %490 = vmatprep.subr.bf16.mxu0 0
      %491 = vmatpush2.bf16.msra.mxu0 0
      %492 = vmatprep.subr.bf16.mxu0 0
      %493 = vmatpush2.bf16.msra.mxu0 0
      %494 = vmatprep.subr.bf16.mxu0 0
      %495 = vmatpush2.bf16.msra.mxu0 0
      %496 = vmatprep.subr.bf16.mxu0 0
      %497 = vmatpush2.bf16.msra.mxu0 0
      %498 = vmatprep.subr.bf16.mxu0 0
      %499 = vmatpush2.bf16.msra.mxu0 0
      %500 = vmatprep.subr.bf16.mxu0 0
      %501 = vmatpush2.bf16.msra.mxu0 0
      %502 = vmatprep.mubr.bf16.mxu0 0
      %503 = vmatmul.mubr.bf16.gmra.mxu0 %v406
      %v504 = vpop.f32.mrf.mxu0
      %v505 = vadd.f32 0.0, %v504
      %v506 = vpop.f32.mrf.mxu0
      %v507 = vpop.f32.mrf.mxu0
      %v508 = vadd.f32 0.0, %v507
      %v509 = vpop.f32.mrf.mxu0
      %510 = vmatprep.mubr.bf16.mxu0 0
      %511 = vmatmul.mubr.bf16.gmra.mxu0 %v407
      %v512 = vpop.f32.mrf.mxu0
      %v513 = vadd.f32 0.0, %v512
      %v514 = vpop.f32.mrf.mxu0
      %v515 = vpop.f32.mrf.mxu0
      %v516 = vadd.f32 0.0, %v515
      %v517 = vpop.f32.mrf.mxu0
      %518 = vmatprep.mubr.bf16.mxu0 0
      %519 = vmatmul.mubr.bf16.gmra.mxu0 %v408
      %v520 = vpop.f32.mrf.mxu0
      %v521 = vadd.f32 0.0, %v520
      %v522 = vpop.f32.mrf.mxu0
      %v523 = vpop.f32.mrf.mxu0
      %v524 = vadd.f32 0.0, %v523
      %v525 = vpop.f32.mrf.mxu0
      %526 = vmatprep.mubr.bf16.mxu0 0
      %527 = vmatmul.mubr.bf16.gmra.mxu0 %v409
      %v528 = vpop.f32.mrf.mxu0
      %v529 = vadd.f32 0.0, %v528
      %v530 = vpop.f32.mrf.mxu0
      %v531 = vpop.f32.mrf.mxu0
      %v532 = vadd.f32 0.0, %v531
      %v533 = vpop.f32.mrf.mxu0
      %534 = vmatprep.mubr.bf16.mxu0 0
      %535 = vmatmul.mubr.bf16.gmra.mxu0 %v410
      %v536 = vpop.f32.mrf.mxu0
      %v537 = vadd.f32 0.0, %v536
      %v538 = vpop.f32.mrf.mxu0
      %v539 = vpop.f32.mrf.mxu0
      %v540 = vadd.f32 0.0, %v539
      %v541 = vpop.f32.mrf.mxu0
      %542 = vmatprep.mubr.bf16.mxu0 0
      %543 = vmatmul.mubr.bf16.gmra.mxu0 %v411
      %v544 = vpop.f32.mrf.mxu0
      %v545 = vadd.f32 0.0, %v544
      %v546 = vpop.f32.mrf.mxu0
      %v547 = vpop.f32.mrf.mxu0
      %v548 = vadd.f32 0.0, %v547
      %v549 = vpop.f32.mrf.mxu0
      %550 = vmatprep.mubr.bf16.mxu0 0
      %551 = vmatmul.mubr.bf16.gmra.mxu0 %v412
      %v552 = vpop.f32.mrf.mxu0
      %v553 = vadd.f32 0.0, %v552
      %v554 = vpop.f32.mrf.mxu0
      %v555 = vpop.f32.mrf.mxu0
      %v556 = vadd.f32 0.0, %v555
      %v557 = vpop.f32.mrf.mxu0
      %558 = vmatprep.mubr.bf16.mxu0 0
      %559 = vmatmul.mubr.bf16.gmra.mxu0 %v413
      %v560 = vpop.f32.mrf.mxu0
      %v561 = vadd.f32 0.0, %v560
      %v562 = vpop.f32.mrf.mxu0
      %v563 = vpop.f32.mrf.mxu0
      %v564 = vadd.f32 0.0, %v563
      %v565 = vpop.f32.mrf.mxu0
      %566 = vdwg.mxu0
      %v567 = vld [vmem:[#allocation2] sm:$0xff]
      %v568 = vld [vmem:[#allocation2 + $0x8] sm:$0xff]
      %v569 = vld [vmem:[#allocation2 + $0x10] sm:$0xff]
      %v570 = vld [vmem:[#allocation2 + $0x18] sm:$0xff]
      %v571 = vld [vmem:[#allocation2 + $0x20] sm:$0xff]
      %v572 = vld [vmem:[#allocation2 + $0x28] sm:$0xff]
      %v573 = vld [vmem:[#allocation2 + $0x30] sm:$0xff]
      %v574 = vld [vmem:[#allocation2 + $0x38] sm:$0xff]
      %v575 = vld [vmem:[#allocation2 + $0x40] sm:$0xff]
      %v576 = vld [vmem:[#allocation2 + $0x48] sm:$0xff]
      %v577 = vld [vmem:[#allocation2 + $0x50] sm:$0xff]
      %v578 = vld [vmem:[#allocation2 + $0x58] sm:$0xff]
      %v579 = vld [vmem:[#allocation2 + $0x60] sm:$0xff]
      %v580 = vld [vmem:[#allocation2 + $0x68] sm:$0xff]
      %v581 = vld [vmem:[#allocation2 + $0x70] sm:$0xff]
      %v582 = vld [vmem:[#allocation2 + $0x78] sm:$0xff]
      %v583 = vld [vmem:[%s299] sm:$0xf]
      %v584 = vld [vmem:[%s299 + $0x4] sm:$0xf]
      %v585 = vld [vmem:[%s299 + $0x8] sm:$0xf]
      %v586 = vld [vmem:[%s299 + $0xc] sm:$0xf]
      %v587 = vld [vmem:[%s299 + $0x10] sm:$0xf]
      %v588 = vld [vmem:[%s299 + $0x14] sm:$0xf]
      %v589 = vld [vmem:[%s299 + $0x18] sm:$0xf]
      %v590 = vld [vmem:[%s299 + $0x1c] sm:$0xf]
      %v591 = vld [vmem:[%s299 + $0x20] sm:$0xf]
      %v592 = vld [vmem:[%s299 + $0x24] sm:$0xf]
      %v593 = vld [vmem:[%s299 + $0x28] sm:$0xf]
      %v594 = vld [vmem:[%s299 + $0x2c] sm:$0xf]
      %v595 = vld [vmem:[%s299 + $0x30] sm:$0xf]
      %v596 = vld [vmem:[%s299 + $0x34] sm:$0xf]
      %v597 = vld [vmem:[%s299 + $0x38] sm:$0xf]
      %v598 = vld [vmem:[%s299 + $0x3c] sm:$0xf]
      %v599 = vpack.c.bf16 %v508, %v505
      %v600 = vpack.c.bf16 %v516, %v513
      %v601 = vpack.c.bf16 %v524, %v521
      %v602 = vpack.c.bf16 %v532, %v529
      %v603 = vpack.c.bf16 %v540, %v537
      %v604 = vpack.c.bf16 %v548, %v545
      %v605 = vpack.c.bf16 %v556, %v553
      %v606 = vpack.c.bf16 %v564, %v561
      %v623 = vunpack.c.l.b16 %v583
      %v624 = vunpack.c.l.b16 %v584
      %v625 = vunpack.c.l.b16 %v585
      %v626 = vunpack.c.l.b16 %v586
      %v627 = vunpack.c.l.b16 %v587
      %v628 = vunpack.c.l.b16 %v588
      %v629 = vunpack.c.l.b16 %v589
      %v630 = vunpack.c.l.b16 %v590
      %v631 = vunpack.c.l.b16 %v591
      %v632 = vunpack.c.l.b16 %v592
      %v633 = vunpack.c.l.b16 %v593
      %v634 = vunpack.c.l.b16 %v594
      %v635 = vunpack.c.l.b16 %v595
      %v636 = vunpack.c.l.b16 %v596
      %v637 = vunpack.c.l.b16 %v597
      %v638 = vunpack.c.l.b16 %v598
      %v639 = vpack.c.b16 %v624, %v623
      %v640 = vpack.c.b16 %v626, %v625
      %v641 = vpack.c.b16 %v628, %v627
      %v642 = vpack.c.b16 %v630, %v629
      %v643 = vpack.c.b16 %v632, %v631
      %v644 = vpack.c.b16 %v634, %v633
      %v645 = vpack.c.b16 %v636, %v635
      %v646 = vpack.c.b16 %v638, %v637
      %655 = vmatprep.subr.bf16.mxu0 0
      %656 = vmatpush1.bf16.msra.mxu0 %v606
      %657 = vmatprep.subr.bf16.mxu0 0
      %658 = vmatpush1.bf16.msra.mxu0 %v605
      %659 = vmatprep.subr.bf16.mxu0 0
      %660 = vmatpush1.bf16.msra.mxu0 %v604
      %661 = vmatprep.subr.bf16.mxu0 0
      %662 = vmatpush1.bf16.msra.mxu0 %v603
      %663 = vmatprep.subr.bf16.mxu0 0
      %664 = vmatpush1.bf16.msra.mxu0 %v602
      %665 = vmatprep.subr.bf16.mxu0 0
      %666 = vmatpush1.bf16.msra.mxu0 %v601
      %667 = vmatprep.subr.bf16.mxu0 0
      %668 = vmatpush1.bf16.msra.mxu0 %v600
      %669 = vmatprep.subr.bf16.mxu0 0
      %670 = vmatpush1.bf16.msra.mxu0 %v599
      %671 = vmatprep.subr.bf16.mxu0 0
      %672 = vmatpush2.bf16.msra.mxu0 0
      %673 = vmatprep.subr.bf16.mxu0 0
      %674 = vmatpush2.bf16.msra.mxu0 0
      %675 = vmatprep.subr.bf16.mxu0 0
      %676 = vmatpush2.bf16.msra.mxu0 0
      %677 = vmatprep.subr.bf16.mxu0 0
      %678 = vmatpush2.bf16.msra.mxu0 0
      %679 = vmatprep.subr.bf16.mxu0 0
      %680 = vmatpush2.bf16.msra.mxu0 0
      %681 = vmatprep.subr.bf16.mxu0 0
      %682 = vmatpush2.bf16.msra.mxu0 0
      %683 = vmatprep.subr.bf16.mxu0 0
      %684 = vmatpush2.bf16.msra.mxu0 0
      %685 = vmatprep.subr.bf16.mxu0 0
      %686 = vmatpush2.bf16.msra.mxu0 0
      %687 = vmatprep.mubr.bf16.mxu0 0
      %688 = vmatmul.mubr.bf16.gmra.mxu0 %v639
      %v689 = vpop.f32.mrf.mxu0
      %v690 = vadd.f32 0.0, %v689
      %v691 = vpop.f32.mrf.mxu0
      %v692 = vpop.f32.mrf.mxu0
      %v693 = vadd.f32 0.0, %v692
      %v694 = vpop.f32.mrf.mxu0
      %695 = vmatprep.mubr.bf16.mxu0 0
      %696 = vmatmul.mubr.bf16.gmra.mxu0 %v640
      %v697 = vpop.f32.mrf.mxu0
      %v698 = vadd.f32 0.0, %v697
      %v699 = vpop.f32.mrf.mxu0
      %v700 = vpop.f32.mrf.mxu0
      %v701 = vadd.f32 0.0, %v700
      %v702 = vpop.f32.mrf.mxu0
      %703 = vmatprep.mubr.bf16.mxu0 0
      %704 = vmatmul.mubr.bf16.gmra.mxu0 %v641
      %v705 = vpop.f32.mrf.mxu0
      %v706 = vadd.f32 0.0, %v705
      %v707 = vpop.f32.mrf.mxu0
      %v708 = vpop.f32.mrf.mxu0
      %v709 = vadd.f32 0.0, %v708
      %v710 = vpop.f32.mrf.mxu0
      %711 = vmatprep.mubr.bf16.mxu0 0
      %712 = vmatmul.mubr.bf16.gmra.mxu0 %v642
      %v713 = vpop.f32.mrf.mxu0
      %v714 = vadd.f32 0.0, %v713
      %v715 = vpop.f32.mrf.mxu0
      %v716 = vpop.f32.mrf.mxu0
      %v717 = vadd.f32 0.0, %v716
      %v718 = vpop.f32.mrf.mxu0
      %719 = vmatprep.mubr.bf16.mxu0 0
      %720 = vmatmul.mubr.bf16.gmra.mxu0 %v643
      %v721 = vpop.f32.mrf.mxu0
      %v722 = vadd.f32 0.0, %v721
      %v723 = vpop.f32.mrf.mxu0
      %v724 = vpop.f32.mrf.mxu0
      %v725 = vadd.f32 0.0, %v724
      %v726 = vpop.f32.mrf.mxu0
      %727 = vmatprep.mubr.bf16.mxu0 0
      %728 = vmatmul.mubr.bf16.gmra.mxu0 %v644
      %v729 = vpop.f32.mrf.mxu0
      %v730 = vadd.f32 0.0, %v729
      %v731 = vpop.f32.mrf.mxu0
      %v732 = vpop.f32.mrf.mxu0
      %v733 = vadd.f32 0.0, %v732
      %v734 = vpop.f32.mrf.mxu0
      %735 = vmatprep.mubr.bf16.mxu0 0
      %736 = vmatmul.mubr.bf16.gmra.mxu0 %v645
      %v737 = vpop.f32.mrf.mxu0
      %v738 = vadd.f32 0.0, %v737
      %v739 = vpop.f32.mrf.mxu0
      %v740 = vpop.f32.mrf.mxu0
      %v741 = vadd.f32 0.0, %v740
      %v742 = vpop.f32.mrf.mxu0
      %743 = vmatprep.mubr.bf16.mxu0 0
      %744 = vmatmul.mubr.bf16.gmra.mxu0 %v646
      %v745 = vpop.f32.mrf.mxu0
      %v746 = vadd.f32 0.0, %v745
      %v747 = vpop.f32.mrf.mxu0
      %v748 = vpop.f32.mrf.mxu0
      %v749 = vadd.f32 0.0, %v748
      %v750 = vpop.f32.mrf.mxu0
      %751 = vdwg.mxu0
      %v752 = vadd.f32 %v567, %v690
      %v753 = vadd.f32 %v568, %v693
      %v754 = vadd.f32 %v569, %v698
      %v755 = vadd.f32 %v570, %v701
      %v756 = vadd.f32 %v571, %v706
      %v757 = vadd.f32 %v572, %v709
      %v758 = vadd.f32 %v573, %v714
      %v759 = vadd.f32 %v574, %v717
      %v760 = vadd.f32 %v575, %v722
      %v761 = vadd.f32 %v576, %v725
      %v762 = vadd.f32 %v577, %v730
      %v763 = vadd.f32 %v578, %v733
      %v764 = vadd.f32 %v579, %v738
      %v765 = vadd.f32 %v580, %v741
      %v766 = vadd.f32 %v581, %v746
      %v767 = vadd.f32 %v582, %v749
      %768 = vst [vmem:[#allocation2] sm:$0xff] %v752
      %769 = vst [vmem:[#allocation2 + $0x8] sm:$0xff] %v753
      %770 = vst [vmem:[#allocation2 + $0x10] sm:$0xff] %v754
      %771 = vst [vmem:[#allocation2 + $0x18] sm:$0xff] %v755
      %772 = vst [vmem:[#allocation2 + $0x20] sm:$0xff] %v756
      %773 = vst [vmem:[#allocation2 + $0x28] sm:$0xff] %v757
      %774 = vst [vmem:[#allocation2 + $0x30] sm:$0xff] %v758
      %775 = vst [vmem:[#allocation2 + $0x38] sm:$0xff] %v759
      %776 = vst [vmem:[#allocation2 + $0x40] sm:$0xff] %v760
      %777 = vst [vmem:[#allocation2 + $0x48] sm:$0xff] %v761
      %778 = vst [vmem:[#allocation2 + $0x50] sm:$0xff] %v762
      %779 = vst [vmem:[#allocation2 + $0x58] sm:$0xff] %v763
      %780 = vst [vmem:[#allocation2 + $0x60] sm:$0xff] %v764
      %781 = vst [vmem:[#allocation2 + $0x68] sm:$0xff] %v765
      %782 = vst [vmem:[#allocation2 + $0x70] sm:$0xff] %v766
      %783 = vst [vmem:[#allocation2 + $0x78] sm:$0xff] %v767
      %s784 = sld [smem:[#allocation7 + %s42]]
      %p785 = scmp.eq.s32.totalorder %s784, 1
      %p786 = pnand %p785, %p321
      %p787 = pneg %p786
      // Predicated region
      $region37: #{_lambda_.4} parent=31 // pred_check
        _
      $region38: #{_lambda_.4} parent=31 // pred_check_branch
        %789 = sbr.rel (%p786) target = $region40
      $region39: #{_lambda_.4} parent=31 // pred_region
        %v790 = vld [vmem:[#allocation2] sm:$0xff]
        %v791 = vld [vmem:[#allocation2 + $0x8] sm:$0xff]
        %v792 = vld [vmem:[#allocation2 + $0x10] sm:$0xff]
        %v793 = vld [vmem:[#allocation2 + $0x18] sm:$0xff]
        %v794 = vld [vmem:[#allocation2 + $0x20] sm:$0xff]
        %v795 = vld [vmem:[#allocation2 + $0x28] sm:$0xff]
        %v796 = vld [vmem:[#allocation2 + $0x30] sm:$0xff]
        %v797 = vld [vmem:[#allocation2 + $0x38] sm:$0xff]
        %v798 = vld [vmem:[#allocation2 + $0x40] sm:$0xff]
        %v799 = vld [vmem:[#allocation2 + $0x48] sm:$0xff]
        %v800 = vld [vmem:[#allocation2 + $0x50] sm:$0xff]
        %v801 = vld [vmem:[#allocation2 + $0x58] sm:$0xff]
        %v802 = vld [vmem:[#allocation2 + $0x60] sm:$0xff]
        %v803 = vld [vmem:[#allocation2 + $0x68] sm:$0xff]
        %v804 = vld [vmem:[#allocation2 + $0x70] sm:$0xff]
        %v805 = vld [vmem:[#allocation2 + $0x78] sm:$0xff]
        %v806 = vlaneseq
        %v807 = vand.u32 %v806, 127
        %vm808 = vcmp.eq.s32.totalorder %v807, 32
        %v809 = vsel %vm808, 1.0, %v790
        %v810 = vsel %vm808, 1.0, %v791
        %v811 = vsel %vm808, 1.0, %v792
        %v812 = vsel %vm808, 1.0, %v793
        %v813 = vsel %vm808, 1.0, %v794
        %v814 = vsel %vm808, 1.0, %v795
        %v815 = vsel %vm808, 1.0, %v796
        %v816 = vsel %vm808, 1.0, %v797
        %v817 = vsel %vm808, 1.0, %v798
        %v818 = vsel %vm808, 1.0, %v799
        %v819 = vsel %vm808, 1.0, %v800
        %v820 = vsel %vm808, 1.0, %v801
        %v821 = vsel %vm808, 1.0, %v802
        %v822 = vsel %vm808, 1.0, %v803
        %v823 = vsel %vm808, 1.0, %v804
        %v824 = vsel %vm808, 1.0, %v805
        %v825 = vpack.c.bf16 %v810, %v809
        %v826 = vpack.c.bf16 %v812, %v811
        %v827 = vpack.c.bf16 %v814, %v813
        %v828 = vpack.c.bf16 %v816, %v815
        %v829 = vpack.c.bf16 %v818, %v817
        %v830 = vpack.c.bf16 %v820, %v819
        %v831 = vpack.c.bf16 %v822, %v821
        %v832 = vpack.c.bf16 %v824, %v823
        %v841 = vunpack.c.l.b16 %v825
        %v842 = vunpack.c.h.b16 %v825
        %v843 = vunpack.c.l.b16 %v826
        %v844 = vunpack.c.h.b16 %v826
        %v845 = vunpack.c.l.b16 %v827
        %v846 = vunpack.c.h.b16 %v827
        %v847 = vunpack.c.l.b16 %v828
        %v848 = vunpack.c.h.b16 %v828
        %v849 = vunpack.c.l.b16 %v829
        %v850 = vunpack.c.h.b16 %v829
        %v851 = vunpack.c.l.b16 %v830
        %v852 = vunpack.c.h.b16 %v830
        %v853 = vunpack.c.l.b16 %v831
        %v854 = vunpack.c.h.b16 %v831
        %v855 = vunpack.c.l.b16 %v832
        %v856 = vunpack.c.h.b16 %v832
        %v857 = vpack.c.b16 %v841, %v841
        %v858 = vpack.c.b16 %v842, %v842
        %v859 = vpack.c.b16 %v843, %v843
        %v860 = vpack.c.b16 %v844, %v844
        %v861 = vpack.c.b16 %v845, %v845
        %v862 = vpack.c.b16 %v846, %v846
        %v863 = vpack.c.b16 %v847, %v847
        %v864 = vpack.c.b16 %v848, %v848
        %v865 = vpack.c.b16 %v849, %v849
        %v866 = vpack.c.b16 %v850, %v850
        %v867 = vpack.c.b16 %v851, %v851
        %v868 = vpack.c.b16 %v852, %v852
        %v869 = vpack.c.b16 %v853, %v853
        %v870 = vpack.c.b16 %v854, %v854
        %v871 = vpack.c.b16 %v855, %v855
        %v872 = vpack.c.b16 %v856, %v856
        %889 = vst [vmem:[%s315] sm:$0xf] %v857
        %890 = vst [vmem:[%s315 + $0x4] sm:$0xf] %v858
        %891 = vst [vmem:[%s315 + $0x8] sm:$0xf] %v859
        %892 = vst [vmem:[%s315 + $0xc] sm:$0xf] %v860
        %893 = vst [vmem:[%s315 + $0x10] sm:$0xf] %v861
        %894 = vst [vmem:[%s315 + $0x14] sm:$0xf] %v862
        %895 = vst [vmem:[%s315 + $0x18] sm:$0xf] %v863
        %896 = vst [vmem:[%s315 + $0x1c] sm:$0xf] %v864
        %897 = vst [vmem:[%s315 + $0x20] sm:$0xf] %v865
        %898 = vst [vmem:[%s315 + $0x24] sm:$0xf] %v866
        %899 = vst [vmem:[%s315 + $0x28] sm:$0xf] %v867
        %900 = vst [vmem:[%s315 + $0x2c] sm:$0xf] %v868
        %901 = vst [vmem:[%s315 + $0x30] sm:$0xf] %v869
        %902 = vst [vmem:[%s315 + $0x34] sm:$0xf] %v870
        %903 = vst [vmem:[%s315 + $0x38] sm:$0xf] %v871
        %904 = vst [vmem:[%s315 + $0x3c] sm:$0xf] %v872
      $region40: #{_lambda_.4} parent=31 // pred_fallthru
        _
      %s905 = sld [smem:[#allocation5 + %s42]]
      %s906 = smul.u32 16, %s41
      %p907 = scmp.lt.s32.totalorder %s905, 2
      %s908 = scalar_select %p907, %s905, 2
      %p909 = scmp.lt.s32.totalorder %s906, 15
      %s910 = scalar_select %p909, %s906, 15
      %s911 = smul.addr %s908, 16
      %s912 = sadd.s32 %s910, %s911
      %s913 = smul.addr %s912, 4
      %s914 = scalar_lea.vmem %s7, %s913
      // Predicated region
      $region41: #{_lambda_.4} parent=31 // pred_check
        %p915 = pneg %p163
      $region42: #{_lambda_.4} parent=31 // pred_check_branch
        %917 = sbr.rel (%p915) target = $region44
      $region43: #{_lambda_.4} parent=31 // pred_region
        %s918 = sld [smem:[#allocation5 + %s42]]
        %s919 = smul.u32 16, %s41
      $region44: #{_lambda_.4} parent=31 // pred_fallthru
        _
    $region32: #{_lambda_.4} parent=5 // pred_fallthru
      _
    %p920 = scmp.le.s32.totalorder 2, %s31
    // Predicated region
    $region45: #{_lambda_.4} parent=5 // pred_check
      %p921 = pneg %p920
    $region46: #{_lambda_.4} parent=5 // pred_check_branch
      %923 = sbr.rel (%p921) target = $region48
    $region47: #{_lambda_.4} parent=5 // pred_region
      %s924 = ssub.s32 %s31, 2
      // Predicated region
      $region49: #{_lambda_.4} parent=47 // pred_check
        %p925 = pneg %p169
      $region50: #{_lambda_.4} parent=47 // pred_check_branch
        %927 = sbr.rel (%p925) target = $region52
      $region51: #{_lambda_.4} parent=47 // pred_region
        %s928 = sld [smem:[#allocation5 + %s45]]
        %s929 = smul.u32 16, %s44
        %p930 = scmp.lt.s32.totalorder %s928, 2
        %s931 = scalar_select %p930, %s928, 2
        %p932 = scmp.lt.s32.totalorder %s929, 15
        %s933 = scalar_select %p932, %s929, 15
        %s934 = smul.addr %s931, 16
        %s935 = sadd.s32 %s933, %s934
        %s936 = smul.addr %s935, 4
        %s937 = scalar_lea.vmem %s7, %s936
      $region52: #{_lambda_.4} parent=47 // pred_fallthru
        _
    $region48: #{_lambda_.4} parent=5 // pred_fallthru
      _
  $region6: #{_lambda_.4} parent=0 // loop_footer
    %s35 = sadd.s32 1, %s31
  $region7: #{_lambda_.4} parent=0 // loop_footer_branch
    %30 = sbr.rel target = $region3
  $region8: #{_lambda_.4} parent=0 // loop_exit
    _

</llo_original>
